<compile_context>
chip_gen: v6e
topology: v6e:2x2x1
jax: 0.10.0
libtpu: 0.0.40
codegen_flags: <defaults>
</compile_context>

<pallas_src>
import functools

import numpy as np
import jax
import jax.numpy as jnp
from jax.experimental import pallas as pl
from jax.experimental.pallas import tpu as pltpu

NUM_CLASSES = 10
STEM_C = 32
HEAD_IN = 640
HEAD_C = 1280

# EfficientNetV2-L stage config:
# (block_type, expand_ratio, kernel, stride, in_c, out_c, num_layers)
V2L_CONFIG = [
    ("fused", 1, 3, 1, 32, 32, 4),
    ("fused", 4, 3, 2, 32, 64, 7),
    ("fused", 4, 3, 2, 64, 96, 7),
    ("mb",    4, 3, 2, 96, 192, 10),
    ("mb",    6, 3, 1, 192, 224, 19),
    ("mb",    6, 3, 2, 224, 384, 25),
    ("mb",    6, 3, 1, 384, 640, 7),
]

_VMEM = pl.BlockSpec(memory_space=pltpu.MemorySpace.VMEM)


# ------------------------- small helpers -------------------------

def _round_up(x, m):
    return (x + m - 1) // m * m


def _tile_lane(n, cap):
    """Lane-aligned tile (multiple of 128) that divides the padded dim."""
    npad = _round_up(n, 128)
    t = cap
    while t > 128 and npad % t:
        t //= 2
    return t, npad


def _tile_m(m, cap=256):
    t = min(cap, _round_up(m, 16))
    return t, _round_up(m, t)


def _cparams(sems, est_bytes):
    # Explicit VMEM budget sized from the chosen tiles (generous headroom, capped
    # well under v7x's 64 MiB physical VMEM).
    vlim = int(min(56 * 2**20, max(24 * 2**20, 4 * est_bytes)))
    return pltpu.CompilerParams(dimension_semantics=sems, vmem_limit_bytes=vlim)


def _sigmoid(x):
    # 1/(1+exp(-x)); the reciprocal runs on the (otherwise idle) EUP slot.
    # Clamp avoids inf intermediates for large-magnitude negative inputs.
    z = jnp.exp(-jnp.clip(x, -30.0, 30.0))
    return pl.reciprocal(1.0 + z, approx=True)


# ------------------------- tiled matmul (conv1x1 / linear) -------------------------

def _mm_kernel(x_ref, w_ref, b_ref, *rest, act, nsteps, has_scale, has_res):
    idx = 0
    s_ref = rest[idx] if has_scale else None
    idx += 1 if has_scale else 0
    r_ref = rest[idx] if has_res else None
    idx += 1 if has_res else 0
    o_ref = rest[idx]
    acc_ref = rest[idx + 1]

    k = pl.program_id(3)

    @pl.when(k == 0)
    def _():
        acc_ref[...] = jnp.zeros_like(acc_ref)

    x = x_ref[0]                              # (tm, tk) bf16
    if has_scale:
        x = x * s_ref[0]                      # fused SE channel scale (per batch)
    acc_ref[...] += jnp.dot(x, w_ref[...], preferred_element_type=jnp.float32)

    @pl.when(k == nsteps - 1)
    def _():
        acc = acc_ref[...] + b_ref[...]       # folded BN bias, fp32
        if act == "silu":
            acc = acc * _sigmoid(acc)
        elif act == "sigmoid":
            acc = _sigmoid(acc)
        if has_res:
            acc = acc + r_ref[0].astype(jnp.float32)   # fused residual add
        o_ref[0] = acc.astype(o_ref.dtype)


def conv_mm(x3, w, b, *, act="none", scale=None, residual=None,
            out_dtype=jnp.bfloat16):
    """act(X @ W + b) with optional per-(batch,channel) input scale (SE) and fused
    residual add.  x3: (B, M, K); w: (K, N); b: (N,)."""
    B, M, K = x3.shape
    N = w.shape[1]
    tk, Kp = _tile_lane(K, 512)
    tn, Np = _tile_lane(N, 256)
    tm, Mp = _tile_m(M)

    xb = jnp.pad(x3.astype(jnp.bfloat16), ((0, 0), (0, Mp - M), (0, Kp - K)))
    wb = jnp.pad(w.astype(jnp.bfloat16), ((0, Kp - K), (0, Np - N)))
    bb = jnp.pad(b.astype(jnp.float32), (0, Np - N)).reshape(1, Np)

    inputs = [xb, wb, bb]
    in_specs = [
        pl.BlockSpec((1, tm, tk), lambda bi, i, j, k: (bi, i, k)),
        pl.BlockSpec((tk, tn), lambda bi, i, j, k: (k, j)),
        pl.BlockSpec((1, tn), lambda bi, i, j, k: (0, j)),
    ]
    has_scale = scale is not None
    has_res = residual is not None
    if has_scale:
        sb = jnp.pad(scale.astype(jnp.bfloat16), ((0, 0), (0, Kp - K)))
        inputs.append(sb.reshape(B, 1, Kp))
        in_specs.append(pl.BlockSpec((1, 1, tk), lambda bi, i, j, k: (bi, 0, k)))
    if has_res:
        rb = jnp.pad(residual.astype(jnp.bfloat16),
                     ((0, 0), (0, Mp - M), (0, Np - N)))
        inputs.append(rb)
        in_specs.append(pl.BlockSpec((1, tm, tn), lambda bi, i, j, k: (bi, i, j)))

    nsteps = Kp // tk
    est = 2 * 2 * (tm * tk + tk * tn + 3 * tm * tn) + tm * tn * 4
    out = pl.pallas_call(
        functools.partial(_mm_kernel, act=act, nsteps=nsteps,
                          has_scale=has_scale, has_res=has_res),
        out_shape=jax.ShapeDtypeStruct((B, Mp, Np), out_dtype),
        grid=(B, Mp // tm, Np // tn, nsteps),
        in_specs=in_specs,
        out_specs=pl.BlockSpec((1, tm, tn), lambda bi, i, j, k: (bi, i, j)),
        scratch_shapes=[pltpu.VMEM((tm, tn), jnp.float32)],
        compiler_params=_cparams(
            ("parallel", "parallel", "parallel", "arbitrary"), est),
    )(*inputs)
    return out[:, :M, :N]


# ------------------------- 3x3 conv (stem / fused MBConv) -------------------------

def _conv3x3_kernel(x_ref, w_ref, b_ref, *rest, act, Ho, Wo, has_res):
    r_ref = rest[0] if has_res else None
    o_ref = rest[1] if has_res else rest[0]
    cin = x_ref.shape[3]
    tn = w_ref.shape[2]

    x = x_ref[0].astype(jnp.float32)                      # (Hp, Wp, Cin)
    acc = jnp.zeros((Ho * Wo, tn), jnp.float32)
    for t in range(9):                                    # taps streamed in-kernel
        di, dj = divmod(t, 3)
        win = x[di:di + Ho, dj:dj + Wo, :].reshape(Ho * Wo, cin)
        acc = acc + jnp.dot(win.astype(jnp.bfloat16), w_ref[t],
                            preferred_element_type=jnp.float32)
    acc = acc + b_ref[...]
    if act == "silu":
        acc = acc * _sigmoid(acc)
    if has_res:
        acc = acc + r_ref[0].astype(jnp.float32).reshape(Ho * Wo, tn)
    o_ref[0] = acc.reshape(Ho, Wo, tn).astype(o_ref.dtype)


def conv3x3_bn_act(x, w9, b, *, stride, act="silu", residual=None):
    """3x3 conv (pad=1) + folded BN + activation (+ fused residual).  The 9 taps are
    accumulated inside the kernel from a padded halo block, so the 9x im2col tensor is
    never materialized in HBM.  Stride-2 layers (4 small ones) are computed at stride 1
    and decimated outside (avoids strided in-kernel loads).
    TODO(synk): add spatial halo tiling for large (224-384px) resolutions."""
    B, H, W, Cin = x.shape
    Cout = w9.shape[1]
    tn, Np = _tile_lane(Cout, 256)

    xp = jnp.pad(x.astype(jnp.bfloat16), ((0, 0), (1, 1), (1, 1), (0, 0)))
    wb = jnp.pad(w9.reshape(9, Cin, Cout),
                 ((0, 0), (0, 0), (0, Np - Cout))).astype(jnp.bfloat16)
    bb = jnp.pad(b.astype(jnp.float32), (0, Np - Cout)).reshape(1, Np)

    inputs = [xp, wb, bb]
    in_specs = [
        pl.BlockSpec((1, H + 2, W + 2, Cin), lambda bi, j: (bi, 0, 0, 0)),
        pl.BlockSpec((9, Cin, tn), lambda bi, j: (0, 0, j)),
        pl.BlockSpec((1, tn), lambda bi, j: (0, j)),
    ]
    has_res = residual is not None
    if has_res:
        rb = jnp.pad(residual.astype(jnp.bfloat16),
                     ((0, 0), (0, 0), (0, 0), (0, Np - Cout)))
        inputs.append(rb)
        in_specs.append(pl.BlockSpec((1, H, W, tn), lambda bi, j: (bi, 0, 0, j)))

    est = ((H + 2) * (W + 2) * Cin * 4 + 9 * Cin * tn * 2
           + 3 * H * W * tn * 4)
    y = pl.pallas_call(
        functools.partial(_conv3x3_kernel, act=act, Ho=H, Wo=W, has_res=has_res),
        out_shape=jax.ShapeDtypeStruct((B, H, W, Np), jnp.bfloat16),
        grid=(B, Np // tn),
        in_specs=in_specs,
        out_specs=pl.BlockSpec((1, H, W, tn), lambda bi, j: (bi, 0, 0, j)),
        compiler_params=_cparams(("parallel", "parallel"), est),
    )(*inputs)
    y = y[:, :, :, :Cout]
    if stride == 2:
        y = y[:, ::2, ::2, :]
    return y


# ------------------------- depthwise 3x3 (+ fused SE pool) -------------------------

def _dw_kernel(x_ref, w_ref, b_ref, o_ref, p_ref, *, Ho, Wo, inv_hw):
    x = x_ref[0].astype(jnp.float32)                      # (Hp, Wp, C)
    acc = jnp.zeros((Ho, Wo, x_ref.shape[3]), jnp.float32)
    for t in range(9):
        di, dj = divmod(t, 3)
        acc = acc + x[di:di + Ho, dj:dj + Wo, :] * w_ref[t]
    acc = acc + b_ref[...]
    acc = acc * _sigmoid(acc)                             # SiLU
    o_ref[0] = acc.astype(o_ref.dtype)
    # SE global-average-pool fused as an epilogue (used by the stride-1 blocks).
    p_ref[0] = jnp.sum(jnp.sum(acc, axis=0), axis=0, keepdims=True) * inv_hw


def dwconv3x3_bn_silu(x, w, b, *, stride):
    """Depthwise 3x3 + folded BN + SiLU; taps generated from a padded halo block.
    Returns (y, pooled) with pooled == per-channel mean (None for stride-2)."""
    B, H, W, C = x.shape
    xp = jnp.pad(x.astype(jnp.bfloat16), ((0, 0), (1, 1), (1, 1), (0, 0)))
    est = (H + 2) * (W + 2) * C * 4 + 2 * H * W * C * 4
    y, pooled = pl.pallas_call(
        functools.partial(_dw_kernel, Ho=H, Wo=W, inv_hw=1.0 / (H * W)),
        out_shape=(jax.ShapeDtypeStruct((B, H, W, C), jnp.bfloat16),
                   jax.ShapeDtypeStruct((B, 1, C), jnp.float32)),
        grid=(B,),
        in_specs=[pl.BlockSpec((1, H + 2, W + 2, C), lambda bi: (bi, 0, 0, 0)),
                  pl.BlockSpec((9, 1, C), lambda bi: (0, 0, 0)),
                  pl.BlockSpec((1, C), lambda bi: (0, 0))],
        out_specs=(pl.BlockSpec((1, H, W, C), lambda bi: (bi, 0, 0, 0)),
                   pl.BlockSpec((1, 1, C), lambda bi: (bi, 0, 0))),
        compiler_params=_cparams(("parallel",), est),
    )(xp, w, b.reshape(1, C))
    if stride == 2:
        # Stride-2 depthwise (2 blocks): decimate the stride-1 output; the SE pool
        # is recomputed on the decimated map outside.
        return y[:, ::2, ::2, :], None
    return y, pooled.reshape(B, C)


# ------------------------- SE gate & global pool -------------------------

def _se_kernel(p_ref, w1_ref, b1_ref, w2_ref, b2_ref, o_ref):
    h = jnp.dot(p_ref[...], w1_ref[...], preferred_element_type=jnp.float32)
    h = h + b1_ref[...]
    h = h * _sigmoid(h)                                   # SiLU
    s = jnp.dot(h, w2_ref[...], preferred_element_type=jnp.float32)
    o_ref[...] = _sigmoid(s + b2_ref[...])                # sigmoid gate


def se_gate(pooled, w1, b1, w2, b2):
    """fc1(SiLU) -> fc2(sigmoid) fused in a single small kernel (pooled stays in VMEM).
    The squeeze width is lane-padded to 128."""
    B, C = pooled.shape
    sq = w1.shape[1]
    SQ = _round_up(sq, 128)
    w1p = jnp.pad(w1, ((0, 0), (0, SQ - sq)))
    b1p = jnp.pad(b1, (0, SQ - sq)).reshape(1, SQ)
    w2p = jnp.pad(w2, ((0, SQ - sq), (0, 0)))
    return pl.pallas_call(
        _se_kernel,
        out_shape=jax.ShapeDtypeStruct((B, C), jnp.float32),
        in_specs=[_VMEM] * 5,
        out_specs=_VMEM,
    )(pooled, w1p, b1p, w2p, b2.reshape(1, C))


def _pool_kernel(x_ref, o_ref):
    o_ref[...] = jnp.mean(x_ref[...].astype(jnp.float32), axis=1)


def global_avg_pool(x_flat):
    # x_flat: (B, H*W, C) -> (B, C) fp32
    B, _, C = x_flat.shape
    return pl.pallas_call(
        _pool_kernel,
        out_shape=jax.ShapeDtypeStruct((B, C), jnp.float32),
        in_specs=[_VMEM],
        out_specs=_VMEM,
    )(x_flat)


# ------------------------- stem im2col (3-channel input only; negligible) ----------

def _extract_patches3x3(x, stride):
    B, H, W, C = x.shape
    Ho = (H + 2 - 3) // stride + 1
    Wo = (W + 2 - 3) // stride + 1
    xp = jnp.pad(x, ((0, 0), (1, 1), (1, 1), (0, 0)))
    pats = []
    for di in range(3):
        for dj in range(3):
            pats.append(xp[:, di:di + stride * (Ho - 1) + 1:stride,
                           dj:dj + stride * (Wo - 1) + 1:stride, :])
    return jnp.stack(pats, axis=3), Ho, Wo


# ------------------------- blocks -------------------------

@functools.partial(jax.jit, static_argnames=("stride", "use_res", "expand_is_1"))
def fused_mbconv_fn(x, p, *, stride, use_res, expand_is_1):
    B, H, W, Cin = x.shape
    if expand_is_1:
        return conv3x3_bn_act(x, p["w"], p["b"], stride=stride, act="silu",
                              residual=(x if use_res else None))
    h = conv3x3_bn_act(x, p["exp_w"], p["exp_b"], stride=stride, act="silu")
    _, Ho, Wo, exp_c = h.shape
    cout = p["proj_w"].shape[1]
    res = x.reshape(B, Ho * Wo, cout) if use_res else None
    y = conv_mm(h.reshape(B, Ho * Wo, exp_c), p["proj_w"], p["proj_b"],
                act="none", residual=res)
    return y.reshape(B, Ho, Wo, cout)


@functools.partial(jax.jit, static_argnames=("stride", "use_res"))
def mbconv_fn(x, p, *, stride, use_res):
    B, H, W, Cin = x.shape
    exp_c = p["exp_w"].shape[1]
    h = conv_mm(x.reshape(B, H * W, Cin), p["exp_w"], p["exp_b"], act="silu")
    h = h.reshape(B, H, W, exp_c)
    h, pooled = dwconv3x3_bn_silu(h, p["dw_w"], p["dw_b"], stride=stride)
    _, Ho, Wo, _ = h.shape
    if pooled is None:                       # stride-2: pool the decimated output
        pooled = global_avg_pool(h.reshape(B, Ho * Wo, exp_c))
    s = se_gate(pooled, p["se1_w"], p["se1_b"], p["se2_w"], p["se2_b"])
    cout = p["proj_w"].shape[1]
    res = x.reshape(B, Ho * Wo, cout) if use_res else None
    # SE scale + projection conv1x1 + residual fused in a single kernel.
    y = conv_mm(h.reshape(B, Ho * Wo, exp_c), p["proj_w"], p["proj_b"],
                act="none", scale=s, residual=res)
    return y.reshape(B, Ho, Wo, cout)


@jax.jit
def stem_fn(x, w, b):
    # 3x3 / stride-2 stem; input has only 3 channels so the im2col expansion is tiny.
    B, H, W, C = x.shape
    p, Ho, Wo = _extract_patches3x3(x, 2)
    y = conv_mm(p.reshape(B, Ho * Wo, 9 * C), w, b, act="silu")
    return y.reshape(B, Ho, Wo, -1)


@jax.jit
def head_fn(x, head_w, head_b, cls_w, cls_b):
    B, H, W, C = x.shape
    h = conv_mm(x.reshape(B, H * W, C), head_w, head_b, act="silu")   # 640 -> 1280
    pooled = global_avg_pool(h)                                       # AdaptiveAvgPool2d(1)
    # Dropout(0.4) is identity in eval mode.
    logits = conv_mm(pooled.reshape(1, B, HEAD_C), cls_w, cls_b,
                     act="none", out_dtype=jnp.float32)               # Linear(1280, nc)
    return logits.reshape(B, -1)


# ------------------------- parameters (deterministic synthetic) -------------------------

def init_params(num_classes):
    rng = np.random.default_rng(0)

    def dense(fan_in, cout):
        w = (rng.standard_normal((fan_in, cout)) / np.sqrt(fan_in)).astype(np.float32)
        b = (rng.standard_normal((cout,)) * 0.01).astype(np.float32)
        return jnp.asarray(w), jnp.asarray(b)

    params = {}
    params["stem_w"], params["stem_b"] = dense(9 * 3, STEM_C)

    blocks, meta = [], []
    for btype, expand, _k, stride, cin, cout, n_layers in V2L_CONFIG:
        for i in range(n_layers):
            in_c = cin if i == 0 else cout
            s = stride if i == 0 else 1
            exp_c = in_c * expand
            use_res = (s == 1 and in_c == cout)
            bp = {}
            if btype == "fused":
                if expand == 1:
                    bp["w"], bp["b"] = dense(9 * in_c, cout)
                else:
                    bp["exp_w"], bp["exp_b"] = dense(9 * in_c, exp_c)
                    bp["proj_w"], bp["proj_b"] = dense(exp_c, cout)
            else:
                sq = max(1, in_c // 4)
                bp["exp_w"], bp["exp_b"] = dense(in_c, exp_c)
                bp["dw_w"] = jnp.asarray(
                    (rng.standard_normal((9, 1, exp_c)) / 3.0).astype(np.float32))
                bp["dw_b"] = jnp.asarray(
                    (rng.standard_normal((exp_c,)) * 0.01).astype(np.float32))
                bp["se1_w"], bp["se1_b"] = dense(exp_c, sq)
                bp["se2_w"], bp["se2_b"] = dense(sq, exp_c)
                bp["proj_w"], bp["proj_b"] = dense(exp_c, cout)
            blocks.append(bp)
            meta.append((btype, s, use_res, expand == 1))

    params["blocks"] = blocks
    params["head_w"], params["head_b"] = dense(HEAD_IN, HEAD_C)
    params["cls_w"], params["cls_b"] = dense(HEAD_C, num_classes)
    return params, meta


# ------------------------- full forward -------------------------

def efficientnet_forward(x_nchw, params, meta):
    x = jnp.transpose(x_nchw, (0, 2, 3, 1)).astype(jnp.bfloat16)   # NCHW -> NHWC, bf16
    x = stem_fn(x, params["stem_w"], params["stem_b"])
    for (btype, stride, use_res, expand_is_1), bp in zip(meta, params["blocks"]):
        if btype == "fused":
            x = fused_mbconv_fn(x, bp, stride=stride, use_res=use_res,
                                expand_is_1=expand_is_1)
        else:
            x = mbconv_fn(x, bp, stride=stride, use_res=use_res)
    return head_fn(x, params["head_w"], params["head_b"],
                   params["cls_w"], params["cls_b"])


if __name__ == "__main__":
    params, meta = init_params(NUM_CLASSES)

    key = jax.random.PRNGKey(0)
    # 32x32 is the smallest spatial size that survives the 32x total downsampling.
    x = jax.random.normal(key, (2, 3, 32, 32), dtype=jnp.float32)

    logits = efficientnet_forward(x, params, meta)
    logits = jax.block_until_ready(logits)

    assert logits.shape == (2, NUM_CLASSES), logits.shape
    assert bool(jnp.all(jnp.isfinite(logits)))
    print("KERNEL_OK")
</pallas_src>

<mosaic_0001>
module attributes {stable_mosaic.version = 11 : i64} {
  func.func @_mm_kernel(%arg0: i32, %arg1: i32, %arg2: i32, %arg3: i32, %arg4: memref<1x256x128xbf16, #tpu.memory_space<vmem>>, %arg5: memref<128x128xbf16, #tpu.memory_space<vmem>>, %arg6: memref<1x128xf32, #tpu.memory_space<vmem>>, %arg7: memref<1x256x128xbf16, #tpu.memory_space<vmem>>, %arg8: memref<256x128xf32, #tpu.memory_space<vmem>>) attributes {dimension_semantics = [#tpu.dimension_semantics<parallel>, #tpu.dimension_semantics<parallel>, #tpu.dimension_semantics<parallel>, #tpu.dimension_semantics<arbitrary>], iteration_bounds = array<i64: 2, 1, 1, 1>, scalar_prefetch = 0 : i64, scratch_operands = 1 : i64, tpu.core_type = #tpu.core_type<tc>, window_params = [{transform_indices = @transform_0, window_bounds = array<i64: 1, 256, 128>}, {transform_indices = @transform_1, window_bounds = array<i64: 128, 128>}, {transform_indices = @transform_2, window_bounds = array<i64: 1, 128>}, {transform_indices = @transform_3, window_bounds = array<i64: 1, 256, 128>}]} {
    %c0_i32 = arith.constant 0 : i32
    %0 = arith.cmpi eq, %arg3, %c0_i32 : i32
    %1 = arith.extui %0 : i1 to i32
    %c0_i32_0 = arith.constant 0 : i32
    %2 = arith.cmpi ne, %1, %c0_i32_0 : i32
    scf.if %2 {
      %cst_11 = arith.constant 0.000000e+00 : f32
      %13 = vector.broadcast %cst_11 : f32 to vector<256x128xf32>
      %c0_12 = arith.constant 0 : index
      %c0_13 = arith.constant 0 : index
      %14 = vector.load %arg8[%c0_12, %c0_13] : memref<256x128xf32, #tpu.memory_space<vmem>>, vector<256x128xf32>
      tpu.vector_store %arg8[%c0_12, %c0_13], %13 {strides = array<i32>} : memref<256x128xf32, #tpu.memory_space<vmem>>, vector<256x128xf32>,
    } else {
    }
    %c0 = arith.constant 0 : index
    %c0_1 = arith.constant 0 : index
    %c0_2 = arith.constant 0 : index
    %3 = vector.load %arg4[%c0, %c0_1, %c0_2] : memref<1x256x128xbf16, #tpu.memory_space<vmem>>, vector<1x256x128xbf16>
    %4 = vector.shape_cast %3 : vector<1x256x128xbf16> to vector<256x128xbf16>
    %c0_3 = arith.constant 0 : index
    %c0_4 = arith.constant 0 : index
    %5 = vector.load %arg8[%c0_3, %c0_4] : memref<256x128xf32, #tpu.memory_space<vmem>>, vector<256x128xf32>
    %c0_5 = arith.constant 0 : index
    %c0_6 = arith.constant 0 : index
    %6 = vector.load %arg5[%c0_5, %c0_6] : memref<128x128xbf16, #tpu.memory_space<vmem>>, vector<128x128xbf16>
    %cst = arith.constant dense<0.000000e+00> : vector<256x128xf32>
    %7 = tpu.matmul %4, %6, %cst {dimension_numbers = #tpu.dot_dimension_numbers<[1], [0], [0], [1], [0, 0, 1, 1], [], []>} : vector<256x128xbf16>, vector<128x128xbf16>, vector<256x128xf32> -> vector<256x128xf32>
    %8 = arith.addf %5, %7 : vector<256x128xf32>
    %c0_7 = arith.constant 0 : index
    %c0_8 = arith.constant 0 : index
    %9 = vector.load %arg8[%c0_7, %c0_8] : memref<256x128xf32, #tpu.memory_space<vmem>>, vector<256x128xf32>
    tpu.vector_store %arg8[%c0_7, %c0_8], %8 {strides = array<i32>} : memref<256x128xf32, #tpu.memory_space<vmem>>, vector<256x128xf32>,
    %c0_i32_9 = arith.constant 0 : i32
    %10 = arith.cmpi eq, %arg3, %c0_i32_9 : i32
    %11 = arith.extui %10 : i1 to i32
    %c0_i32_10 = arith.constant 0 : i32
    %12 = arith.cmpi ne, %11, %c0_i32_10 : i32
    scf.if %12 {
      %c0_11 = arith.constant 0 : index
      %c0_12 = arith.constant 0 : index
      %13 = vector.load %arg8[%c0_11, %c0_12] : memref<256x128xf32, #tpu.memory_space<vmem>>, vector<256x128xf32>
      %c0_13 = arith.constant 0 : index
      %c0_14 = arith.constant 0 : index
      %14 = vector.load %arg6[%c0_13, %c0_14] : memref<1x128xf32, #tpu.memory_space<vmem>>, vector<1x128xf32>
      %15 = vector.broadcast %14 : vector<1x128xf32> to vector<256x128xf32>
      %16 = arith.addf %13, %15 : vector<256x128xf32>
      %cst_15 = arith.constant -3.000000e+01 : f32
      %cst_16 = arith.constant 3.000000e+01 : f32
      %17 = vector.broadcast %cst_15 : f32 to vector<256x128xf32>
      %18 = arith.maximumf %17, %16 : vector<256x128xf32>
      %19 = vector.broadcast %cst_16 : f32 to vector<256x128xf32>
      %20 = arith.minimumf %19, %18 : vector<256x128xf32>
      %cst_17 = arith.constant 0.000000e+00 : f32
      %21 = vector.broadcast %cst_17 : f32 to vector<256x128xf32>
      %22 = arith.subf %21, %20 : vector<256x128xf32>
      %23 = math.exp %22 : vector<256x128xf32>
      %cst_18 = arith.constant 1.000000e+00 : f32
      %24 = vector.broadcast %cst_18 : f32 to vector<256x128xf32>
      %25 = arith.addf %24, %23 : vector<256x128xf32>
      %26 = tpu.reciprocal %25 {approx = true} : vector<256x128xf32> -> vector<256x128xf32>
      %27 = arith.mulf %16, %26 : vector<256x128xf32>
      %28 = arith.truncf %27 : vector<256x128xf32> to vector<256x128xbf16>
      %c0_19 = arith.constant 0 : index
      %c0_20 = arith.constant 0 : index
      %c0_21 = arith.constant 0 : index
      %29 = vector.load %arg7[%c0_19, %c0_20, %c0_21] : memref<1x256x128xbf16, #tpu.memory_space<vmem>>, vector<1x256x128xbf16>
      %30 = vector.shape_cast %29 : vector<1x256x128xbf16> to vector<256x128xbf16>
      %31 = vector.shape_cast %28 : vector<256x128xbf16> to vector<1x256x128xbf16>
      tpu.vector_store %arg7[%c0_19, %c0_20, %c0_21], %31 {strides = array<i32>} : memref<1x256x128xbf16, #tpu.memory_space<vmem>>, vector<1x256x128xbf16>,
    } else {
    }
    return
  }
  func.func @transform_0(%arg0: i32, %arg1: i32, %arg2: i32, %arg3: i32) -> (i32, i32, i32) {
    %c0_i32 = arith.constant 0 : i32
    return %arg0, %arg1, %arg3 : i32, i32, i32
  }
  func.func @transform_1(%arg0: i32, %arg1: i32, %arg2: i32, %arg3: i32) -> (i32, i32) {
    %c0_i32 = arith.constant 0 : i32
    return %arg3, %arg2 : i32, i32
  }
  func.func @transform_2(%arg0: i32, %arg1: i32, %arg2: i32, %arg3: i32) -> (i32, i32) {
    %c0_i32 = arith.constant 0 : i32
    %c0_i32_0 = arith.constant 0 : i32
    return %c0_i32, %arg2 : i32, i32
  }
  func.func @transform_3(%arg0: i32, %arg1: i32, %arg2: i32, %arg3: i32) -> (i32, i32, i32) {
    %c0_i32 = arith.constant 0 : i32
    return %arg0, %arg1, %arg2 : i32, i32, i32
  }
}

</mosaic_0001>

<llo_original>
// kernel: stem_fn.1
$region0: #{stem_fn.1}
  #allocation0 [shape = 'u32[]', space=smem, size = 0x4, offset = 0x4, fixed_abs, tag = 'smem constant byte address 0x4 - core index']
  #allocation1 [shape = 'u32[144,128]{1,0:T(1,128)}', space=vmem, size = 0x12000, scoped, tag = 'internal scratch']
  #allocation2 [shape = 'f32[256,128]{1,0:T(8,128)}', space=vmem, size = 0x20000, scoped, tag = 'scratch operand']
  %s0 = inlined_call_operand.vmem [shape: bf16[2,256,128], index: 0, kind: input, shape index: {}]
  %s1 = inlined_call_operand.vmem [shape: bf16[128,128], index: 1, kind: input, shape index: {}]
  %s2 = inlined_call_operand.vmem [shape: f32[1,128], index: 2, kind: input, shape index: {}]
  %s3 = inlined_call_operand.hbm [shape: bf16[2,256,128], index: 3, kind: output, shape index: {}]
  %s4 = sld [smem:[#allocation0]]
  $region53: #{stem_fn.1} parent=0
    _
  %s6 = ssub.s32 1, %s4
  %s7 = scalar_select 0, %s6, %s4
  $region1: #{stem_fn.1} parent=0
    #allocation3 [shape = 'u8[131072]{0}', space=vmem, size = 0x20000, scoped, tag = 'output window, operand 0']
    #allocation4 [shape = 's32[2]{0}', space=sflag, size = 0x8, scoped, tag = 'scoped memory for stem_fn.1']
    %8 = vsyncpa [#allocation4], 0
    %s9 = scalar_lea.sflag [#allocation4], 1
    %10 = vsyncpa %s9, 0
    loop: start=0, step=1, limit=4
    $region2: #{stem_fn.1} parent=1 // loop_pre_header
      _
    $region3: #{stem_fn.1} parent=1 // loop_header
      %s12 = sphi 0, %s16
      %p13 = scmp.ge.s32.totalorder %s12, 4
      %s19 = sphi 0, %s45
      %s20 = sphi 0, %s41
      %s21 = sphi 0, %s37
      %s22 = sphi 0, %s33
      %s23 = sphi 0, %s19
      %s24 = sphi 0, %s20
      %s25 = sphi 0, %s21
      %s26 = sphi 0, %s22
      %s27 = sphi 0, %s23
      %s28 = sphi 0, %s24
      %s29 = sphi 0, %s25
      %s30 = sphi 0, %s26
      %s52 = sphi 0, %s54
      %s55 = sphi 0, %s52
      %s56 = sphi 0, %s55
      %s72 = sphi 0, %s56
      %s80 = sphi 0, %s82
      %s83 = sphi 0, %s80
      %s84 = sphi 0, %s83
      %s100 = sphi 0, %s84
      %s106 = sphi 0, %s108
      %s109 = sphi 0, %s106
      %s110 = sphi 0, %s109
      %s126 = sphi 0, %s110
      %s136 = sphi 0, %s138
      %s139 = sphi 0, %s136
      %s140 = sphi 0, %s139
      %s156 = sphi 0, %s140
    $region4: #{stem_fn.1} parent=1 // loop_header_branch
      %15 = sbr.rel (%p13) target = $region8
    $region5: #{stem_fn.1} parent=1 // loop_body
      %s17 = ssub.s32 %s12, 1
      %s18 = ssub.s32 %s12, 2
      %s31 = sadd.s32 1, %s22
      %p32 = scmp.ge.s32.totalorder %s31, 1
      %s33 = scalar_select %p32, 0, %s31
      %s34 = sadd.s32 1, %s21
      %s35 = scalar_select %p32, %s34, %s21
      %p36 = scmp.ge.s32.totalorder %s35, 1
      %s37 = scalar_select %p36, 0, %s35
      %s38 = sadd.s32 1, %s20
      %s39 = scalar_select %p36, %s38, %s20
      %p40 = scmp.ge.s32.totalorder %s39, 1
      %s41 = scalar_select %p40, 0, %s39
      %s42 = sadd.s32 1, %s19
      %s43 = scalar_select %p40, %s42, %s19
      %p44 = scmp.ge.s32.totalorder %s43, 2
      %s45 = scalar_select %p44, 0, %s43
      %s46 = ssub.s32 %s19, %s45
      %s47 = ssub.s32 %s20, %s41
      %s48 = sor.u32 %s46, %s47
      %s49 = ssub.s32 %s22, %s33
      %s50 = sor.u32 %s48, %s49
      %p51 = scmp.eq.s32.totalorder %s50, 0
      %s53 = sadd.s32 %s52, 1
      %s54 = scalar_select %p51, %s52, %s53
      %p57 = pneg %p51
      %p58 = scmp.eq.s32.totalorder %s12, 1
      %p59 = por %p57, %p58
      %p60 = scmp.ne.s32.totalorder %s52, %s55
      %p61 = scmp.eq.s32.totalorder %s12, 0
      %p62 = por %p60, %p61
      %p63 = scmp.ne.s32.totalorder %s52, %s55
      %p64 = scmp.eq.s32.totalorder %s17, 1
      %p65 = por %p63, %p64
      %p66 = scmp.ne.s32.totalorder %s55, %s56
      %p67 = scmp.eq.s32.totalorder %s17, 0
      %p68 = por %p66, %p67
      %p69 = scmp.ne.s32.totalorder %s55, %s56
      %p70 = scmp.eq.s32.totalorder %s18, 1
      %p71 = por %p69, %p70
      %p73 = scmp.ne.s32.totalorder %s56, %s72
      %p74 = scmp.eq.s32.totalorder %s18, 0
      %p75 = por %p73, %p74
      %s76 = ssub.s32 %s22, %s33
      %s77 = ssub.s32 %s21, %s37
      %s78 = sor.u32 %s76, %s77
      %p79 = scmp.eq.s32.totalorder %s78, 0
      %s81 = sadd.s32 %s80, 1
      %s82 = scalar_select %p79, %s80, %s81
      %p85 = pneg %p79
      %p86 = scmp.eq.s32.totalorder %s12, 1
      %p87 = por %p85, %p86
      %p88 = scmp.ne.s32.totalorder %s80, %s83
      %p89 = scmp.eq.s32.totalorder %s12, 0
      %p90 = por %p88, %p89
      %p91 = scmp.ne.s32.totalorder %s80, %s83
      %p92 = scmp.eq.s32.totalorder %s17, 1
      %p93 = por %p91, %p92
      %p94 = scmp.ne.s32.totalorder %s83, %s84
      %p95 = scmp.eq.s32.totalorder %s17, 0
      %p96 = por %p94, %p95
      %p97 = scmp.ne.s32.totalorder %s83, %s84
      %p98 = scmp.eq.s32.totalorder %s18, 1
      %p99 = por %p97, %p98
      %p101 = scmp.ne.s32.totalorder %s84, %s100
      %p102 = scmp.eq.s32.totalorder %s18, 0
      %p103 = por %p101, %p102
      %s104 = ssub.s32 %s21, %s37
      %p105 = scmp.eq.s32.totalorder %s104, 0
      %s107 = sadd.s32 %s106, 1
      %s108 = scalar_select %p105, %s106, %s107
      %p111 = pneg %p105
      %p112 = scmp.eq.s32.totalorder %s12, 1
      %p113 = por %p111, %p112
      %p114 = scmp.ne.s32.totalorder %s106, %s109
      %p115 = scmp.eq.s32.totalorder %s12, 0
      %p116 = por %p114, %p115
      %p117 = scmp.ne.s32.totalorder %s106, %s109
      %p118 = scmp.eq.s32.totalorder %s17, 1
      %p119 = por %p117, %p118
      %p120 = scmp.ne.s32.totalorder %s109, %s110
      %p121 = scmp.eq.s32.totalorder %s17, 0
      %p122 = por %p120, %p121
      %p123 = scmp.ne.s32.totalorder %s109, %s110
      %p124 = scmp.eq.s32.totalorder %s18, 1
      %p125 = por %p123, %p124
      %p127 = scmp.ne.s32.totalorder %s110, %s126
      %p128 = scmp.eq.s32.totalorder %s18, 0
      %p129 = por %p127, %p128
      %s130 = ssub.s32 %s19, %s45
      %s131 = ssub.s32 %s20, %s41
      %s132 = sor.u32 %s130, %s131
      %s133 = ssub.s32 %s21, %s37
      %s134 = sor.u32 %s132, %s133
      %p135 = scmp.eq.s32.totalorder %s134, 0
      %s137 = sadd.s32 %s136, 1
      %s138 = scalar_select %p135, %s136, %s137
      %p141 = pneg %p135
      %p142 = scmp.eq.s32.totalorder %s12, 1
      %p143 = por %p141, %p142
      %p144 = scmp.ne.s32.totalorder %s136, %s139
      %p145 = scmp.eq.s32.totalorder %s12, 0
      %p146 = por %p144, %p145
      %p147 = scmp.ne.s32.totalorder %s136, %s139
      %p148 = scmp.eq.s32.totalorder %s17, 1
      %p149 = por %p147, %p148
      %p150 = scmp.ne.s32.totalorder %s139, %s140
      %p151 = scmp.eq.s32.totalorder %s17, 0
      %p152 = por %p150, %p151
      %p153 = scmp.ne.s32.totalorder %s139, %s140
      %p154 = scmp.eq.s32.totalorder %s18, 1
      %p155 = por %p153, %p154
      %p157 = scmp.ne.s32.totalorder %s140, %s156
      %p158 = scmp.eq.s32.totalorder %s18, 0
      %p159 = por %p157, %p158
      %p160 = scmp.le.s32.totalorder 1, %s12
      %p161 = scmp.lt.s32.totalorder %s12, 3
      %p162 = pnand %p160, %p161
      %p163 = pneg %p162
      // Predicated region
      $region9: #{stem_fn.1} parent=5 // pred_check
        _
      $region10: #{stem_fn.1} parent=5 // pred_check_branch
        %165 = sbr.rel (%p162) target = $region12
      $region11: #{stem_fn.1} parent=5 // pred_region
        %s166 = ssub.s32 %s12, 1
        // Predicated region
        $region13: #{stem_fn.1} parent=11 // pred_check
          %p167 = pneg %p96
        $region14: #{stem_fn.1} parent=11 // pred_check_branch
          %169 = sbr.rel (%p167) target = $region16
        $region15: #{stem_fn.1} parent=11 // pred_region
          %s170 = smul.u32 16, %s26
          %p171 = scmp.lt.s32.totalorder %s170, 15
          %s172 = scalar_select %p171, %s170, 15
          %p173 = scmp.lt.s32.totalorder %s25, 0
          %s174 = scalar_select %p173, %s25, 0
          %s175 = sadd.s32 %s174, %s172
          %s176 = smul.addr %s175, 4
          %s177 = scalar_lea.vmem %s1, %s176
          %s178 = smul.u32 16, %s26
        $region16: #{stem_fn.1} parent=11 // pred_fallthru
          _
        // Predicated region
        $region17: #{stem_fn.1} parent=11 // pred_check
          %p179 = pneg %p122
        $region18: #{stem_fn.1} parent=11 // pred_check_branch
          %181 = sbr.rel (%p179) target = $region20
        $region19: #{stem_fn.1} parent=11 // pred_region
          %p182 = scmp.lt.s32.totalorder %s25, 0
          %s183 = scalar_select %p182, %s25, 0
          %s184 = scalar_lea.vmem %s2, %s183
        $region20: #{stem_fn.1} parent=11 // pred_fallthru
          _
      $region12: #{stem_fn.1} parent=5 // pred_fallthru
        _
      %p185 = scmp.lt.s32.totalorder %s12, 2
      // Predicated region
      $region21: #{stem_fn.1} parent=5 // pred_check
        %p186 = pneg %p185
      $region22: #{stem_fn.1} parent=5 // pred_check_branch
        %188 = sbr.rel (%p186) target = $region24
      $region23: #{stem_fn.1} parent=5 // pred_region
        // Predicated region
        $region25: #{stem_fn.1} parent=23 // pred_check
          %p189 = pneg %p62
        $region26: #{stem_fn.1} parent=23 // pred_check_branch
          %191 = sbr.rel (%p189) target = $region28
        $region27: #{stem_fn.1} parent=23 // pred_region
          %s192 = smul.u32 32, %s20
          %p193 = scmp.lt.s32.totalorder %s19, 1
          %s194 = scalar_select %p193, %s19, 1
          %p195 = scmp.lt.s32.totalorder %s192, 31
          %s196 = scalar_select %p195, %s192, 31
          %p197 = scmp.lt.s32.totalorder %s22, 0
          %s198 = scalar_select %p197, %s22, 0
          %s199 = sadd.s32 %s198, %s196
          %s200 = smul.addr %s194, 32
          %s201 = sadd.s32 %s199, %s200
          %s202 = smul.addr %s201, 4
          %s203 = scalar_lea.vmem %s0, %s202
          %s204 = smul.u32 32, %s20
        $region28: #{stem_fn.1} parent=23 // pred_fallthru
          _
      $region24: #{stem_fn.1} parent=5 // pred_fallthru
        _
      %p205 = scmp.le.s32.totalorder 1, %s12
      %p206 = scmp.lt.s32.totalorder %s12, 3
      %p207 = pnand %p205, %p206
      %p208 = pneg %p207
      // Predicated region
      $region29: #{stem_fn.1} parent=5 // pred_check
        _
      $region30: #{stem_fn.1} parent=5 // pred_check_branch
        %210 = sbr.rel (%p207) target = $region32
      $region31: #{stem_fn.1} parent=5 // pred_region
        %s211 = ssub.s32 %s12, 1
        %s212 = smul.u32 32, %s24
        %p213 = scmp.lt.s32.totalorder %s23, 1
        %s214 = scalar_select %p213, %s23, 1
        %p215 = scmp.lt.s32.totalorder %s212, 31
        %s216 = scalar_select %p215, %s212, 31
        %p217 = scmp.lt.s32.totalorder %s26, 0
        %s218 = scalar_select %p217, %s26, 0
        %s219 = sadd.s32 %s218, %s216
        %s220 = smul.addr %s214, 32
        %s221 = sadd.s32 %s219, %s220
        %s222 = smul.addr %s221, 4
        %s223 = scalar_lea.vmem %s0, %s222
        %p224 = pneg %p68
        %p225 = pneg %p65
        %s226 = smul.u32 16, %s26
        %p227 = scmp.lt.s32.totalorder %s226, 15
        %s228 = scalar_select %p227, %s226, 15
        %p229 = scmp.lt.s32.totalorder %s25, 0
        %s230 = scalar_select %p229, %s25, 0
        %s231 = sadd.s32 %s230, %s228
        %s232 = smul.addr %s231, 4
        %s233 = scalar_lea.vmem %s1, %s232
        %p234 = pneg %p96
        %p235 = pneg %p93
        %p236 = scmp.lt.s32.totalorder %s25, 0
        %s237 = scalar_select %p236, %s25, 0
        %s238 = scalar_lea.vmem %s2, %s237
        %p239 = pneg %p122
        %p240 = pneg %p119
        %p241 = pneg %p152
        %p242 = pneg %p149
        %s243 = sand.u32 %s139, 1
        %s244 = scalar_lea.sflag [#allocation4], %s243
        %s245 = sand.u32 %s139, 1
        %s246 = smul.addr %s245, 128
        %s247 = scalar_lea.vmem [#allocation3], %s246
        %s248 = smul.u32 32, %s24
        %p249 = scmp.lt.s32.totalorder %s23, 1
        %s250 = scalar_select %p249, %s23, 1
        %p251 = scmp.lt.s32.totalorder %s248, 31
        %s252 = scalar_select %p251, %s248, 31
        %p253 = scmp.lt.s32.totalorder %s26, 0
        %s254 = scalar_select %p253, %s26, 0
        %s255 = sadd.s32 %s254, %s252
        %s256 = smul.addr %s250, 32
        %s257 = sadd.s32 %s255, %s256
        %s258 = smul.addr %s257, 4
        %s259 = scalar_lea.vmem %s0, %s258
        %s260 = smul.u32 32, %s24
        %s261 = smul.u32 16, %s26
        %p262 = scmp.lt.s32.totalorder %s261, 15
        %s263 = scalar_select %p262, %s261, 15
        %p264 = scmp.lt.s32.totalorder %s25, 0
        %s265 = scalar_select %p264, %s25, 0
        %s266 = sadd.s32 %s265, %s263
        %s267 = smul.addr %s266, 4
        %s268 = scalar_lea.vmem %s1, %s267
        %s269 = smul.u32 16, %s26
        %p270 = scmp.lt.s32.totalorder %s25, 0
        %s271 = scalar_select %p270, %s25, 0
        %s272 = scalar_lea.vmem %s2, %s271
        %s273 = smul.u32 32, %s24
        %p275 = scmp.eq.s32.totalorder %s26, 0
        // Predicated region
        $region33: #{stem_fn.1} parent=31 // pred_check
          %p276 = pneg %p275
        $region34: #{stem_fn.1} parent=31 // pred_check_branch
          %278 = sbr.rel (%p276) target = $region36
        $region35: #{stem_fn.1} parent=31 // pred_region
          %279 = vst [vmem:[#allocation2] sm:$0xff] 0.0
          %280 = vst [vmem:[#allocation2 + $0x8] sm:$0xff] 0.0
          %281 = vst [vmem:[#allocation2 + $0x10] sm:$0xff] 0.0
          %282 = vst [vmem:[#allocation2 + $0x18] sm:$0xff] 0.0
          %283 = vst [vmem:[#allocation2 + $0x20] sm:$0xff] 0.0
          %284 = vst [vmem:[#allocation2 + $0x28] sm:$0xff] 0.0
          %285 = vst [vmem:[#allocation2 + $0x30] sm:$0xff] 0.0
          %286 = vst [vmem:[#allocation2 + $0x38] sm:$0xff] 0.0
          %287 = vst [vmem:[#allocation2 + $0x40] sm:$0xff] 0.0
          %288 = vst [vmem:[#allocation2 + $0x48] sm:$0xff] 0.0
          %289 = vst [vmem:[#allocation2 + $0x50] sm:$0xff] 0.0
          %290 = vst [vmem:[#allocation2 + $0x58] sm:$0xff] 0.0
          %291 = vst [vmem:[#allocation2 + $0x60] sm:$0xff] 0.0
          %292 = vst [vmem:[#allocation2 + $0x68] sm:$0xff] 0.0
          %293 = vst [vmem:[#allocation2 + $0x70] sm:$0xff] 0.0
          %294 = vst [vmem:[#allocation2 + $0x78] sm:$0xff] 0.0
          %295 = vst [vmem:[#allocation2 + $0x80] sm:$0xff] 0.0
          %296 = vst [vmem:[#allocation2 + $0x88] sm:$0xff] 0.0
          %297 = vst [vmem:[#allocation2 + $0x90] sm:$0xff] 0.0
          %298 = vst [vmem:[#allocation2 + $0x98] sm:$0xff] 0.0
          %299 = vst [vmem:[#allocation2 + $0xa0] sm:$0xff] 0.0
          %300 = vst [vmem:[#allocation2 + $0xa8] sm:$0xff] 0.0
          %301 = vst [vmem:[#allocation2 + $0xb0] sm:$0xff] 0.0
          %302 = vst [vmem:[#allocation2 + $0xb8] sm:$0xff] 0.0
          %303 = vst [vmem:[#allocation2 + $0xc0] sm:$0xff] 0.0
          %304 = vst [vmem:[#allocation2 + $0xc8] sm:$0xff] 0.0
          %305 = vst [vmem:[#allocation2 + $0xd0] sm:$0xff] 0.0
          %306 = vst [vmem:[#allocation2 + $0xd8] sm:$0xff] 0.0
          %307 = vst [vmem:[#allocation2 + $0xe0] sm:$0xff] 0.0
          %308 = vst [vmem:[#allocation2 + $0xe8] sm:$0xff] 0.0
          %309 = vst [vmem:[#allocation2 + $0xf0] sm:$0xff] 0.0
          %310 = vst [vmem:[#allocation2 + $0xf8] sm:$0xff] 0.0
        $region36: #{stem_fn.1} parent=31 // pred_fallthru
          _
        %v311 = vld [vmem:[%s259] sm:$0xf]
        %v312 = vld [vmem:[%s259 + $0x4] sm:$0xf]
        %v313 = vld [vmem:[%s259 + $0x8] sm:$0xf]
        %v314 = vld [vmem:[%s259 + $0xc] sm:$0xf]
        %v315 = vld [vmem:[%s259 + $0x10] sm:$0xf]
        %v316 = vld [vmem:[%s259 + $0x14] sm:$0xf]
        %v317 = vld [vmem:[%s259 + $0x18] sm:$0xf]
        %v318 = vld [vmem:[%s259 + $0x1c] sm:$0xf]
        %v319 = vld [vmem:[%s259 + $0x20] sm:$0xf]
        %v320 = vld [vmem:[%s259 + $0x24] sm:$0xf]
        %v321 = vld [vmem:[%s259 + $0x28] sm:$0xf]
        %v322 = vld [vmem:[%s259 + $0x2c] sm:$0xf]
        %v323 = vld [vmem:[%s259 + $0x30] sm:$0xf]
        %v324 = vld [vmem:[%s259 + $0x34] sm:$0xf]
        %v325 = vld [vmem:[%s259 + $0x38] sm:$0xf]
        %v326 = vld [vmem:[%s259 + $0x3c] sm:$0xf]
        %v327 = vld [vmem:[%s259 + $0x40] sm:$0xf]
        %v328 = vld [vmem:[%s259 + $0x44] sm:$0xf]
        %v329 = vld [vmem:[%s259 + $0x48] sm:$0xf]
        %v330 = vld [vmem:[%s259 + $0x4c] sm:$0xf]
        %v331 = vld [vmem:[%s259 + $0x50] sm:$0xf]
        %v332 = vld [vmem:[%s259 + $0x54] sm:$0xf]
        %v333 = vld [vmem:[%s259 + $0x58] sm:$0xf]
        %v334 = vld [vmem:[%s259 + $0x5c] sm:$0xf]
        %v335 = vld [vmem:[%s259 + $0x60] sm:$0xf]
        %v336 = vld [vmem:[%s259 + $0x64] sm:$0xf]
        %v337 = vld [vmem:[%s259 + $0x68] sm:$0xf]
        %v338 = vld [vmem:[%s259 + $0x6c] sm:$0xf]
        %v339 = vld [vmem:[%s259 + $0x70] sm:$0xf]
        %v340 = vld [vmem:[%s259 + $0x74] sm:$0xf]
        %v341 = vld [vmem:[%s259 + $0x78] sm:$0xf]
        %v342 = vld [vmem:[%s259 + $0x7c] sm:$0xf]
        %v343 = vld [vmem:[#allocation2] sm:$0xff]
        %v344 = vld [vmem:[#allocation2 + $0x8] sm:$0xff]
        %v345 = vld [vmem:[#allocation2 + $0x10] sm:$0xff]
        %v346 = vld [vmem:[#allocation2 + $0x18] sm:$0xff]
        %v347 = vld [vmem:[#allocation2 + $0x20] sm:$0xff]
        %v348 = vld [vmem:[#allocation2 + $0x28] sm:$0xff]
        %v349 = vld [vmem:[#allocation2 + $0x30] sm:$0xff]
        %v350 = vld [vmem:[#allocation2 + $0x38] sm:$0xff]
        %v351 = vld [vmem:[#allocation2 + $0x40] sm:$0xff]
        %v352 = vld [vmem:[#allocation2 + $0x48] sm:$0xff]
        %v353 = vld [vmem:[#allocation2 + $0x50] sm:$0xff]
        %v354 = vld [vmem:[#allocation2 + $0x58] sm:$0xff]
        %v355 = vld [vmem:[#allocation2 + $0x60] sm:$0xff]
        %v356 = vld [vmem:[#allocation2 + $0x68] sm:$0xff]
        %v357 = vld [vmem:[#allocation2 + $0x70] sm:$0xff]
        %v358 = vld [vmem:[#allocation2 + $0x78] sm:$0xff]
        %v359 = vld [vmem:[#allocation2 + $0x80] sm:$0xff]
        %v360 = vld [vmem:[#allocation2 + $0x88] sm:$0xff]
        %v361 = vld [vmem:[#allocation2 + $0x90] sm:$0xff]
        %v362 = vld [vmem:[#allocation2 + $0x98] sm:$0xff]
        %v363 = vld [vmem:[#allocation2 + $0xa0] sm:$0xff]
        %v364 = vld [vmem:[#allocation2 + $0xa8] sm:$0xff]
        %v365 = vld [vmem:[#allocation2 + $0xb0] sm:$0xff]
        %v366 = vld [vmem:[#allocation2 + $0xb8] sm:$0xff]
        %v367 = vld [vmem:[#allocation2 + $0xc0] sm:$0xff]
        %v368 = vld [vmem:[#allocation2 + $0xc8] sm:$0xff]
        %v369 = vld [vmem:[#allocation2 + $0xd0] sm:$0xff]
        %v370 = vld [vmem:[#allocation2 + $0xd8] sm:$0xff]
        %v371 = vld [vmem:[#allocation2 + $0xe0] sm:$0xff]
        %v372 = vld [vmem:[#allocation2 + $0xe8] sm:$0xff]
        %v373 = vld [vmem:[#allocation2 + $0xf0] sm:$0xff]
        %v374 = vld [vmem:[#allocation2 + $0xf8] sm:$0xff]
        %v375 = vld [vmem:[%s268] sm:$0xf]
        %v376 = vld [vmem:[%s268 + $0x4] sm:$0xf]
        %v377 = vld [vmem:[%s268 + $0x8] sm:$0xf]
        %v378 = vld [vmem:[%s268 + $0xc] sm:$0xf]
        %v379 = vld [vmem:[%s268 + $0x10] sm:$0xf]
        %v380 = vld [vmem:[%s268 + $0x14] sm:$0xf]
        %v381 = vld [vmem:[%s268 + $0x18] sm:$0xf]
        %v382 = vld [vmem:[%s268 + $0x1c] sm:$0xf]
        %v383 = vld [vmem:[%s268 + $0x20] sm:$0xf]
        %v384 = vld [vmem:[%s268 + $0x24] sm:$0xf]
        %v385 = vld [vmem:[%s268 + $0x28] sm:$0xf]
        %v386 = vld [vmem:[%s268 + $0x2c] sm:$0xf]
        %v387 = vld [vmem:[%s268 + $0x30] sm:$0xf]
        %v388 = vld [vmem:[%s268 + $0x34] sm:$0xf]
        %v389 = vld [vmem:[%s268 + $0x38] sm:$0xf]
        %v390 = vld [vmem:[%s268 + $0x3c] sm:$0xf]
        %v423 = vunpack.c.l.b16 %v311
        %v424 = vunpack.c.l.b16 %v312
        %v425 = vunpack.c.l.b16 %v313
        %v426 = vunpack.c.l.b16 %v314
        %v427 = vunpack.c.l.b16 %v315
        %v428 = vunpack.c.l.b16 %v316
        %v429 = vunpack.c.l.b16 %v317
        %v430 = vunpack.c.l.b16 %v318
        %v431 = vunpack.c.l.b16 %v319
        %v432 = vunpack.c.l.b16 %v320
        %v433 = vunpack.c.l.b16 %v321
        %v434 = vunpack.c.l.b16 %v322
        %v435 = vunpack.c.l.b16 %v323
        %v436 = vunpack.c.l.b16 %v324
        %v437 = vunpack.c.l.b16 %v325
        %v438 = vunpack.c.l.b16 %v326
        %v439 = vunpack.c.l.b16 %v327
        %v440 = vunpack.c.l.b16 %v328
        %v441 = vunpack.c.l.b16 %v329
        %v442 = vunpack.c.l.b16 %v330
        %v443 = vunpack.c.l.b16 %v331
        %v444 = vunpack.c.l.b16 %v332
        %v445 = vunpack.c.l.b16 %v333
        %v446 = vunpack.c.l.b16 %v334
        %v447 = vunpack.c.l.b16 %v335
        %v448 = vunpack.c.l.b16 %v336
        %v449 = vunpack.c.l.b16 %v337
        %v450 = vunpack.c.l.b16 %v338
        %v451 = vunpack.c.l.b16 %v339
        %v452 = vunpack.c.l.b16 %v340
        %v453 = vunpack.c.l.b16 %v341
        %v454 = vunpack.c.l.b16 %v342
        %v455 = vpack.c.b16 %v424, %v423
        %v456 = vpack.c.b16 %v426, %v425
        %v457 = vpack.c.b16 %v428, %v427
        %v458 = vpack.c.b16 %v430, %v429
        %v459 = vpack.c.b16 %v432, %v431
        %v460 = vpack.c.b16 %v434, %v433
        %v461 = vpack.c.b16 %v436, %v435
        %v462 = vpack.c.b16 %v438, %v437
        %v463 = vpack.c.b16 %v440, %v439
        %v464 = vpack.c.b16 %v442, %v441
        %v465 = vpack.c.b16 %v444, %v443
        %v466 = vpack.c.b16 %v446, %v445
        %v467 = vpack.c.b16 %v448, %v447
        %v468 = vpack.c.b16 %v450, %v449
        %v469 = vpack.c.b16 %v452, %v451
        %v470 = vpack.c.b16 %v454, %v453
        %v503 = vunpack.c.l.b16 %v375
        %v504 = vunpack.c.l.b16 %v376
        %v505 = vunpack.c.l.b16 %v377
        %v506 = vunpack.c.l.b16 %v378
        %v507 = vunpack.c.l.b16 %v379
        %v508 = vunpack.c.l.b16 %v380
        %v509 = vunpack.c.l.b16 %v381
        %v510 = vunpack.c.l.b16 %v382
        %v511 = vunpack.c.l.b16 %v383
        %v512 = vunpack.c.l.b16 %v384
        %v513 = vunpack.c.l.b16 %v385
        %v514 = vunpack.c.l.b16 %v386
        %v515 = vunpack.c.l.b16 %v387
        %v516 = vunpack.c.l.b16 %v388
        %v517 = vunpack.c.l.b16 %v389
        %v518 = vunpack.c.l.b16 %v390
        %v519 = vpack.c.b16 %v504, %v503
        %v520 = vpack.c.b16 %v506, %v505
        %v521 = vpack.c.b16 %v508, %v507
        %v522 = vpack.c.b16 %v510, %v509
        %v523 = vpack.c.b16 %v512, %v511
        %v524 = vpack.c.b16 %v514, %v513
        %v525 = vpack.c.b16 %v516, %v515
        %v526 = vpack.c.b16 %v518, %v517
        %535 = vmatprep.subr.bf16.mxu0 0
        %536 = vmatpush1.bf16.msra.mxu0 %v526
        %537 = vmatprep.subr.bf16.mxu0 0
        %538 = vmatpush1.bf16.msra.mxu0 %v525
        %539 = vmatprep.subr.bf16.mxu0 0
        %540 = vmatpush1.bf16.msra.mxu0 %v524
        %541 = vmatprep.subr.bf16.mxu0 0
        %542 = vmatpush1.bf16.msra.mxu0 %v523
        %543 = vmatprep.subr.bf16.mxu0 0
        %544 = vmatpush1.bf16.msra.mxu0 %v522
        %545 = vmatprep.subr.bf16.mxu0 0
        %546 = vmatpush1.bf16.msra.mxu0 %v521
        %547 = vmatprep.subr.bf16.mxu0 0
        %548 = vmatpush1.bf16.msra.mxu0 %v520
        %549 = vmatprep.subr.bf16.mxu0 0
        %550 = vmatpush1.bf16.msra.mxu0 %v519
        %551 = vmatprep.subr.bf16.mxu0 0
        %552 = vmatpush2.bf16.msra.mxu0 0
        %553 = vmatprep.subr.bf16.mxu0 0
        %554 = vmatpush2.bf16.msra.mxu0 0
        %555 = vmatprep.subr.bf16.mxu0 0
        %556 = vmatpush2.bf16.msra.mxu0 0
        %557 = vmatprep.subr.bf16.mxu0 0
        %558 = vmatpush2.bf16.msra.mxu0 0
        %559 = vmatprep.subr.bf16.mxu0 0
        %560 = vmatpush2.bf16.msra.mxu0 0
        %561 = vmatprep.subr.bf16.mxu0 0
        %562 = vmatpush2.bf16.msra.mxu0 0
        %563 = vmatprep.subr.bf16.mxu0 0
        %564 = vmatpush2.bf16.msra.mxu0 0
        %565 = vmatprep.subr.bf16.mxu0 0
        %566 = vmatpush2.bf16.msra.mxu0 0
        %567 = vmatprep.mubr.bf16.mxu0 0
        %568 = vmatmul.mubr.bf16.gmra.mxu0 %v455
        %v569 = vpop.f32.mrf.mxu0
        %v570 = vadd.f32 0.0, %v569
        %v571 = vpop.f32.mrf.mxu0
        %v572 = vpop.f32.mrf.mxu0
        %v573 = vadd.f32 0.0, %v572
        %v574 = vpop.f32.mrf.mxu0
        %575 = vmatprep.mubr.bf16.mxu0 0
        %576 = vmatmul.mubr.bf16.gmra.mxu0 %v456
        %v577 = vpop.f32.mrf.mxu0
        %v578 = vadd.f32 0.0, %v577
        %v579 = vpop.f32.mrf.mxu0
        %v580 = vpop.f32.mrf.mxu0
        %v581 = vadd.f32 0.0, %v580
        %v582 = vpop.f32.mrf.mxu0
        %583 = vmatprep.mubr.bf16.mxu0 0
        %584 = vmatmul.mubr.bf16.gmra.mxu0 %v457
        %v585 = vpop.f32.mrf.mxu0
        %v586 = vadd.f32 0.0, %v585
        %v587 = vpop.f32.mrf.mxu0
        %v588 = vpop.f32.mrf.mxu0
        %v589 = vadd.f32 0.0, %v588
        %v590 = vpop.f32.mrf.mxu0
        %591 = vmatprep.mubr.bf16.mxu0 0
        %592 = vmatmul.mubr.bf16.gmra.mxu0 %v458
        %v593 = vpop.f32.mrf.mxu0
        %v594 = vadd.f32 0.0, %v593
        %v595 = vpop.f32.mrf.mxu0
        %v596 = vpop.f32.mrf.mxu0
        %v597 = vadd.f32 0.0, %v596
        %v598 = vpop.f32.mrf.mxu0
        %599 = vmatprep.mubr.bf16.mxu0 0
        %600 = vmatmul.mubr.bf16.gmra.mxu0 %v459
        %v601 = vpop.f32.mrf.mxu0
        %v602 = vadd.f32 0.0, %v601
        %v603 = vpop.f32.mrf.mxu0
        %v604 = vpop.f32.mrf.mxu0
        %v605 = vadd.f32 0.0, %v604
        %v606 = vpop.f32.mrf.mxu0
        %607 = vmatprep.mubr.bf16.mxu0 0
        %608 = vmatmul.mubr.bf16.gmra.mxu0 %v460
        %v609 = vpop.f32.mrf.mxu0
        %v610 = vadd.f32 0.0, %v609
        %v611 = vpop.f32.mrf.mxu0
        %v612 = vpop.f32.mrf.mxu0
        %v613 = vadd.f32 0.0, %v612
        %v614 = vpop.f32.mrf.mxu0
        %615 = vmatprep.mubr.bf16.mxu0 0
        %616 = vmatmul.mubr.bf16.gmra.mxu0 %v461
        %v617 = vpop.f32.mrf.mxu0
        %v618 = vadd.f32 0.0, %v617
        %v619 = vpop.f32.mrf.mxu0
        %v620 = vpop.f32.mrf.mxu0
        %v621 = vadd.f32 0.0, %v620
        %v622 = vpop.f32.mrf.mxu0
        %623 = vmatprep.mubr.bf16.mxu0 0
        %624 = vmatmul.mubr.bf16.gmra.mxu0 %v462
        %v625 = vpop.f32.mrf.mxu0
        %v626 = vadd.f32 0.0, %v625
        %v627 = vpop.f32.mrf.mxu0
        %v628 = vpop.f32.mrf.mxu0
        %v629 = vadd.f32 0.0, %v628
        %v630 = vpop.f32.mrf.mxu0
        %631 = vmatprep.mubr.bf16.mxu0 0
        %632 = vmatmul.mubr.bf16.gmra.mxu0 %v463
        %v633 = vpop.f32.mrf.mxu0
        %v634 = vadd.f32 0.0, %v633
        %v635 = vpop.f32.mrf.mxu0
        %v636 = vpop.f32.mrf.mxu0
        %v637 = vadd.f32 0.0, %v636
        %v638 = vpop.f32.mrf.mxu0
        %639 = vmatprep.mubr.bf16.mxu0 0
        %640 = vmatmul.mubr.bf16.gmra.mxu0 %v464
        %v641 = vpop.f32.mrf.mxu0
        %v642 = vadd.f32 0.0, %v641
        %v643 = vpop.f32.mrf.mxu0
        %v644 = vpop.f32.mrf.mxu0
        %v645 = vadd.f32 0.0, %v644
        %v646 = vpop.f32.mrf.mxu0
        %647 = vmatprep.mubr.bf16.mxu0 0
        %648 = vmatmul.mubr.bf16.gmra.mxu0 %v465
        %v649 = vpop.f32.mrf.mxu0
        %v650 = vadd.f32 0.0, %v649
        %v651 = vpop.f32.mrf.mxu0
        %v652 = vpop.f32.mrf.mxu0
        %v653 = vadd.f32 0.0, %v652
        %v654 = vpop.f32.mrf.mxu0
        %655 = vmatprep.mubr.bf16.mxu0 0
        %656 = vmatmul.mubr.bf16.gmra.mxu0 %v466
        %v657 = vpop.f32.mrf.mxu0
        %v658 = vadd.f32 0.0, %v657
        %v659 = vpop.f32.mrf.mxu0
        %v660 = vpop.f32.mrf.mxu0
        %v661 = vadd.f32 0.0, %v660
        %v662 = vpop.f32.mrf.mxu0
        %663 = vmatprep.mubr.bf16.mxu0 0
        %664 = vmatmul.mubr.bf16.gmra.mxu0 %v467
        %v665 = vpop.f32.mrf.mxu0
        %v666 = vadd.f32 0.0, %v665
        %v667 = vpop.f32.mrf.mxu0
        %v668 = vpop.f32.mrf.mxu0
        %v669 = vadd.f32 0.0, %v668
        %v670 = vpop.f32.mrf.mxu0
        %671 = vmatprep.mubr.bf16.mxu0 0
        %672 = vmatmul.mubr.bf16.gmra.mxu0 %v468
        %v673 = vpop.f32.mrf.mxu0
        %v674 = vadd.f32 0.0, %v673
        %v675 = vpop.f32.mrf.mxu0
        %v676 = vpop.f32.mrf.mxu0
        %v677 = vadd.f32 0.0, %v676
        %v678 = vpop.f32.mrf.mxu0
        %679 = vmatprep.mubr.bf16.mxu0 0
        %680 = vmatmul.mubr.bf16.gmra.mxu0 %v469
        %v681 = vpop.f32.mrf.mxu0
        %v682 = vadd.f32 0.0, %v681
        %v683 = vpop.f32.mrf.mxu0
        %v684 = vpop.f32.mrf.mxu0
        %v685 = vadd.f32 0.0, %v684
        %v686 = vpop.f32.mrf.mxu0
        %687 = vmatprep.mubr.bf16.mxu0 0
        %688 = vmatmul.mubr.bf16.gmra.mxu0 %v470
        %v689 = vpop.f32.mrf.mxu0
        %v690 = vadd.f32 0.0, %v689
        %v691 = vpop.f32.mrf.mxu0
        %v692 = vpop.f32.mrf.mxu0
        %v693 = vadd.f32 0.0, %v692
        %v694 = vpop.f32.mrf.mxu0
        %695 = vdwg.mxu0
        %v696 = vadd.f32 %v343, %v570
        %v697 = vadd.f32 %v344, %v573
        %v698 = vadd.f32 %v345, %v578
        %v699 = vadd.f32 %v346, %v581
        %v700 = vadd.f32 %v347, %v586
        %v701 = vadd.f32 %v348, %v589
        %v702 = vadd.f32 %v349, %v594
        %v703 = vadd.f32 %v350, %v597
        %v704 = vadd.f32 %v351, %v602
        %v705 = vadd.f32 %v352, %v605
        %v706 = vadd.f32 %v353, %v610
        %v707 = vadd.f32 %v354, %v613
        %v708 = vadd.f32 %v355, %v618
        %v709 = vadd.f32 %v356, %v621
        %v710 = vadd.f32 %v357, %v626
        %v711 = vadd.f32 %v358, %v629
        %v712 = vadd.f32 %v359, %v634
        %v713 = vadd.f32 %v360, %v637
        %v714 = vadd.f32 %v361, %v642
        %v715 = vadd.f32 %v362, %v645
        %v716 = vadd.f32 %v363, %v650
        %v717 = vadd.f32 %v364, %v653
        %v718 = vadd.f32 %v365, %v658
        %v719 = vadd.f32 %v366, %v661
        %v720 = vadd.f32 %v367, %v666
        %v721 = vadd.f32 %v368, %v669
        %v722 = vadd.f32 %v369, %v674
        %v723 = vadd.f32 %v370, %v677
        %v724 = vadd.f32 %v371, %v682
        %v725 = vadd.f32 %v372, %v685
        %v726 = vadd.f32 %v373, %v690
        %v727 = vadd.f32 %v374, %v693
        %728 = vst [vmem:[#allocation2] sm:$0xff] %v696
        %729 = vst [vmem:[#allocation2 + $0x8] sm:$0xff] %v697
        %730 = vst [vmem:[#allocation2 + $0x10] sm:$0xff] %v698
        %731 = vst [vmem:[#allocation2 + $0x18] sm:$0xff] %v699
        %732 = vst [vmem:[#allocation2 + $0x20] sm:$0xff] %v700
        %733 = vst [vmem:[#allocation2 + $0x28] sm:$0xff] %v701
        %734 = vst [vmem:[#allocation2 + $0x30] sm:$0xff] %v702
        %735 = vst [vmem:[#allocation2 + $0x38] sm:$0xff] %v703
        %736 = vst [vmem:[#allocation2 + $0x40] sm:$0xff] %v704
        %737 = vst [vmem:[#allocation2 + $0x48] sm:$0xff] %v705
        %738 = vst [vmem:[#allocation2 + $0x50] sm:$0xff] %v706
        %739 = vst [vmem:[#allocation2 + $0x58] sm:$0xff] %v707
        %740 = vst [vmem:[#allocation2 + $0x60] sm:$0xff] %v708
        %741 = vst [vmem:[#allocation2 + $0x68] sm:$0xff] %v709
        %742 = vst [vmem:[#allocation2 + $0x70] sm:$0xff] %v710
        %743 = vst [vmem:[#allocation2 + $0x78] sm:$0xff] %v711
        %744 = vst [vmem:[#allocation2 + $0x80] sm:$0xff] %v712
        %745 = vst [vmem:[#allocation2 + $0x88] sm:$0xff] %v713
        %746 = vst [vmem:[#allocation2 + $0x90] sm:$0xff] %v714
        %747 = vst [vmem:[#allocation2 + $0x98] sm:$0xff] %v715
        %748 = vst [vmem:[#allocation2 + $0xa0] sm:$0xff] %v716
        %749 = vst [vmem:[#allocation2 + $0xa8] sm:$0xff] %v717
        %750 = vst [vmem:[#allocation2 + $0xb0] sm:$0xff] %v718
        %751 = vst [vmem:[#allocation2 + $0xb8] sm:$0xff] %v719
        %752 = vst [vmem:[#allocation2 + $0xc0] sm:$0xff] %v720
        %753 = vst [vmem:[#allocation2 + $0xc8] sm:$0xff] %v721
        %754 = vst [vmem:[#allocation2 + $0xd0] sm:$0xff] %v722
        %755 = vst [vmem:[#allocation2 + $0xd8] sm:$0xff] %v723
        %756 = vst [vmem:[#allocation2 + $0xe0] sm:$0xff] %v724
        %757 = vst [vmem:[#allocation2 + $0xe8] sm:$0xff] %v725
        %758 = vst [vmem:[#allocation2 + $0xf0] sm:$0xff] %v726
        %759 = vst [vmem:[#allocation2 + $0xf8] sm:$0xff] %v727
        // Predicated region
        $region37: #{stem_fn.1} parent=31 // pred_check
          %p760 = pneg %p275
        $region38: #{stem_fn.1} parent=31 // pred_check_branch
          %762 = sbr.rel (%p760) target = $region40
        $region39: #{stem_fn.1} parent=31 // pred_region
          %v763 = vld [vmem:[#allocation2] sm:$0xff]
          %v764 = vld [vmem:[#allocation2 + $0x8] sm:$0xff]
          %v765 = vld [vmem:[#allocation2 + $0x10] sm:$0xff]
          %v766 = vld [vmem:[#allocation2 + $0x18] sm:$0xff]
          %v767 = vld [vmem:[#allocation2 + $0x20] sm:$0xff]
          %v768 = vld [vmem:[#allocation2 + $0x28] sm:$0xff]
          %v769 = vld [vmem:[#allocation2 + $0x30] sm:$0xff]
          %v770 = vld [vmem:[#allocation2 + $0x38] sm:$0xff]
          %v771 = vld [vmem:[#allocation2 + $0x40] sm:$0xff]
          %v772 = vld [vmem:[#allocation2 + $0x48] sm:$0xff]
          %v773 = vld [vmem:[#allocation2 + $0x50] sm:$0xff]
          %v774 = vld [vmem:[#allocation2 + $0x58] sm:$0xff]
          %v775 = vld [vmem:[#allocation2 + $0x60] sm:$0xff]
          %v776 = vld [vmem:[#allocation2 + $0x68] sm:$0xff]
          %v777 = vld [vmem:[#allocation2 + $0x70] sm:$0xff]
          %v778 = vld [vmem:[#allocation2 + $0x78] sm:$0xff]
          %v779 = vld [vmem:[#allocation2 + $0x80] sm:$0xff]
          %v780 = vld [vmem:[#allocation2 + $0x88] sm:$0xff]
          %v781 = vld [vmem:[#allocation2 + $0x90] sm:$0xff]
          %v782 = vld [vmem:[#allocation2 + $0x98] sm:$0xff]
          %v783 = vld [vmem:[#allocation2 + $0xa0] sm:$0xff]
          %v784 = vld [vmem:[#allocation2 + $0xa8] sm:$0xff]
          %v785 = vld [vmem:[#allocation2 + $0xb0] sm:$0xff]
          %v786 = vld [vmem:[#allocation2 + $0xb8] sm:$0xff]
          %v787 = vld [vmem:[#allocation2 + $0xc0] sm:$0xff]
          %v788 = vld [vmem:[#allocation2 + $0xc8] sm:$0xff]
          %v789 = vld [vmem:[#allocation2 + $0xd0] sm:$0xff]
          %v790 = vld [vmem:[#allocation2 + $0xd8] sm:$0xff]
          %v791 = vld [vmem:[#allocation2 + $0xe0] sm:$0xff]
          %v792 = vld [vmem:[#allocation2 + $0xe8] sm:$0xff]
          %v793 = vld [vmem:[#allocation2 + $0xf0] sm:$0xff]
          %v794 = vld [vmem:[#allocation2 + $0xf8] sm:$0xff]
          %v795 = vld [vmem:[%s272] sm:$0x1]
          %v797 = vlaneseq
          %v798 = vshrl.u32 %v797, 7
          %v799 = vsub.s32 0, %v798
          %v800 = vrot.slane %v795, %v799
          %v802 = vadd.f32 %v763, %v800
          %v803 = vadd.f32 %v764, %v800
          %v804 = vadd.f32 %v765, %v800
          %v805 = vadd.f32 %v766, %v800
          %v806 = vadd.f32 %v767, %v800
          %v807 = vadd.f32 %v768, %v800
          %v808 = vadd.f32 %v769, %v800
          %v809 = vadd.f32 %v770, %v800
          %v810 = vadd.f32 %v771, %v800
          %v811 = vadd.f32 %v772, %v800
          %v812 = vadd.f32 %v773, %v800
          %v813 = vadd.f32 %v774, %v800
          %v814 = vadd.f32 %v775, %v800
          %v815 = vadd.f32 %v776, %v800
          %v816 = vadd.f32 %v777, %v800
          %v817 = vadd.f32 %v778, %v800
          %v818 = vadd.f32 %v779, %v800
          %v819 = vadd.f32 %v780, %v800
          %v820 = vadd.f32 %v781, %v800
          %v821 = vadd.f32 %v782, %v800
          %v822 = vadd.f32 %v783, %v800
          %v823 = vadd.f32 %v784, %v800
          %v824 = vadd.f32 %v785, %v800
          %v825 = vadd.f32 %v786, %v800
          %v826 = vadd.f32 %v787, %v800
          %v827 = vadd.f32 %v788, %v800
          %v828 = vadd.f32 %v789, %v800
          %v829 = vadd.f32 %v790, %v800
          %v830 = vadd.f32 %v791, %v800
          %v831 = vadd.f32 %v792, %v800
          %v832 = vadd.f32 %v793, %v800
          %v833 = vadd.f32 %v794, %v800
          %v834 = vmax.f32 %v802, -30.0
          %v835 = vmax.f32 %v803, -30.0
          %v836 = vmax.f32 %v804, -30.0
          %v837 = vmax.f32 %v805, -30.0
          %v838 = vmax.f32 %v806, -30.0
          %v839 = vmax.f32 %v807, -30.0
          %v840 = vmax.f32 %v808, -30.0
          %v841 = vmax.f32 %v809, -30.0
          %v842 = vmax.f32 %v810, -30.0
          %v843 = vmax.f32 %v811, -30.0
          %v844 = vmax.f32 %v812, -30.0
          %v845 = vmax.f32 %v813, -30.0
          %v846 = vmax.f32 %v814, -30.0
          %v847 = vmax.f32 %v815, -30.0
          %v848 = vmax.f32 %v816, -30.0
          %v849 = vmax.f32 %v817, -30.0
          %v850 = vmax.f32 %v818, -30.0
          %v851 = vmax.f32 %v819, -30.0
          %v852 = vmax.f32 %v820, -30.0
          %v853 = vmax.f32 %v821, -30.0
          %v854 = vmax.f32 %v822, -30.0
          %v855 = vmax.f32 %v823, -30.0
          %v856 = vmax.f32 %v824, -30.0
          %v857 = vmax.f32 %v825, -30.0
          %v858 = vmax.f32 %v826, -30.0
          %v859 = vmax.f32 %v827, -30.0
          %v860 = vmax.f32 %v828, -30.0
          %v861 = vmax.f32 %v829, -30.0
          %v862 = vmax.f32 %v830, -30.0
          %v863 = vmax.f32 %v831, -30.0
          %v864 = vmax.f32 %v832, -30.0
          %v865 = vmax.f32 %v833, -30.0
          %v866 = vmin.f32 %v834, 30.0
          %v867 = vmin.f32 %v835, 30.0
          %v868 = vmin.f32 %v836, 30.0
          %v869 = vmin.f32 %v837, 30.0
          %v870 = vmin.f32 %v838, 30.0
          %v871 = vmin.f32 %v839, 30.0
          %v872 = vmin.f32 %v840, 30.0
          %v873 = vmin.f32 %v841, 30.0
          %v874 = vmin.f32 %v842, 30.0
          %v875 = vmin.f32 %v843, 30.0
          %v876 = vmin.f32 %v844, 30.0
          %v877 = vmin.f32 %v845, 30.0
          %v878 = vmin.f32 %v846, 30.0
          %v879 = vmin.f32 %v847, 30.0
          %v880 = vmin.f32 %v848, 30.0
          %v881 = vmin.f32 %v849, 30.0
          %v882 = vmin.f32 %v850, 30.0
          %v883 = vmin.f32 %v851, 30.0
          %v884 = vmin.f32 %v852, 30.0
          %v885 = vmin.f32 %v853, 30.0
          %v886 = vmin.f32 %v854, 30.0
          %v887 = vmin.f32 %v855, 30.0
          %v888 = vmin.f32 %v856, 30.0
          %v889 = vmin.f32 %v857, 30.0
          %v890 = vmin.f32 %v858, 30.0
          %v891 = vmin.f32 %v859, 30.0
          %v892 = vmin.f32 %v860, 30.0
          %v893 = vmin.f32 %v861, 30.0
          %v894 = vmin.f32 %v862, 30.0
          %v895 = vmin.f32 %v863, 30.0
          %v896 = vmin.f32 %v864, 30.0
          %v897 = vmin.f32 %v865, 30.0
          %v898 = vsub.f32 0.0, %v866
          %v899 = vsub.f32 0.0, %v867
          %v900 = vsub.f32 0.0, %v868
          %v901 = vsub.f32 0.0, %v869
          %v902 = vsub.f32 0.0, %v870
          %v903 = vsub.f32 0.0, %v871
          %v904 = vsub.f32 0.0, %v872
          %v905 = vsub.f32 0.0, %v873
          %v906 = vsub.f32 0.0, %v874
          %v907 = vsub.f32 0.0, %v875
          %v908 = vsub.f32 0.0, %v876
          %v909 = vsub.f32 0.0, %v877
          %v910 = vsub.f32 0.0, %v878
          %v911 = vsub.f32 0.0, %v879
          %v912 = vsub.f32 0.0, %v880
          %v913 = vsub.f32 0.0, %v881
          %v914 = vsub.f32 0.0, %v882
          %v915 = vsub.f32 0.0, %v883
          %v916 = vsub.f32 0.0, %v884
          %v917 = vsub.f32 0.0, %v885
          %v918 = vsub.f32 0.0, %v886
          %v919 = vsub.f32 0.0, %v887
          %v920 = vsub.f32 0.0, %v888
          %v921 = vsub.f32 0.0, %v889
          %v922 = vsub.f32 0.0, %v890
          %v923 = vsub.f32 0.0, %v891
          %v924 = vsub.f32 0.0, %v892
          %v925 = vsub.f32 0.0, %v893
          %v926 = vsub.f32 0.0, %v894
          %v927 = vsub.f32 0.0, %v895
          %v928 = vsub.f32 0.0, %v896
          %v929 = vsub.f32 0.0, %v897
          %v930 = vmul.f32 %v898, 1.442695
          %v931 = vpow.pop %v930
          %v932 = vmul.f32 %v899, 1.442695
          %v933 = vpow.pop %v932
          %v934 = vmul.f32 %v900, 1.442695
          %v935 = vpow.pop %v934
          %v936 = vmul.f32 %v901, 1.442695
          %v937 = vpow.pop %v936
          %v938 = vmul.f32 %v902, 1.442695
          %v939 = vpow.pop %v938
          %v940 = vmul.f32 %v903, 1.442695
          %v941 = vpow.pop %v940
          %v942 = vmul.f32 %v904, 1.442695
          %v943 = vpow.pop %v942
          %v944 = vmul.f32 %v905, 1.442695
          %v945 = vpow.pop %v944
          %v946 = vmul.f32 %v906, 1.442695
          %v947 = vpow.pop %v946
          %v948 = vmul.f32 %v907, 1.442695
          %v949 = vpow.pop %v948
          %v950 = vmul.f32 %v908, 1.442695
          %v951 = vpow.pop %v950
          %v952 = vmul.f32 %v909, 1.442695
          %v953 = vpow.pop %v952
          %v954 = vmul.f32 %v910, 1.442695
          %v955 = vpow.pop %v954
          %v956 = vmul.f32 %v911, 1.442695
          %v957 = vpow.pop %v956
          %v958 = vmul.f32 %v912, 1.442695
          %v959 = vpow.pop %v958
          %v960 = vmul.f32 %v913, 1.442695
          %v961 = vpow.pop %v960
          %v962 = vmul.f32 %v914, 1.442695
          %v963 = vpow.pop %v962
          %v964 = vmul.f32 %v915, 1.442695
          %v965 = vpow.pop %v964
          %v966 = vmul.f32 %v916, 1.442695
          %v967 = vpow.pop %v966
          %v968 = vmul.f32 %v917, 1.442695
          %v969 = vpow.pop %v968
          %v970 = vmul.f32 %v918, 1.442695
          %v971 = vpow.pop %v970
          %v972 = vmul.f32 %v919, 1.442695
          %v973 = vpow.pop %v972
          %v974 = vmul.f32 %v920, 1.442695
          %v975 = vpow.pop %v974
          %v976 = vmul.f32 %v921, 1.442695
          %v977 = vpow.pop %v976
          %v978 = vmul.f32 %v922, 1.442695
          %v979 = vpow.pop %v978
          %v980 = vmul.f32 %v923, 1.442695
          %v981 = vpow.pop %v980
          %v982 = vmul.f32 %v924, 1.442695
          %v983 = vpow.pop %v982
          %v984 = vmul.f32 %v925, 1.442695
          %v985 = vpow.pop %v984
          %v986 = vmul.f32 %v926, 1.442695
          %v987 = vpow.pop %v986
          %v988 = vmul.f32 %v927, 1.442695
          %v989 = vpow.pop %v988
          %v990 = vmul.f32 %v928, 1.442695
          %v991 = vpow.pop %v990
          %v992 = vmul.f32 %v929, 1.442695
          %v993 = vpow.pop %v992
          %v994 = vadd.f32 %v931, 1.0
          %v995 = vadd.f32 %v933, 1.0
          %v996 = vadd.f32 %v935, 1.0
          %v997 = vadd.f32 %v937, 1.0
          %v998 = vadd.f32 %v939, 1.0
          %v999 = vadd.f32 %v941, 1.0
          %v1000 = vadd.f32 %v943, 1.0
          %v1001 = vadd.f32 %v945, 1.0
          %v1002 = vadd.f32 %v947, 1.0
          %v1003 = vadd.f32 %v949, 1.0
          %v1004 = vadd.f32 %v951, 1.0
          %v1005 = vadd.f32 %v953, 1.0
          %v1006 = vadd.f32 %v955, 1.0
          %v1007 = vadd.f32 %v957, 1.0
          %v1008 = vadd.f32 %v959, 1.0
          %v1009 = vadd.f32 %v961, 1.0
          %v1010 = vadd.f32 %v963, 1.0
          %v1011 = vadd.f32 %v965, 1.0
          %v1012 = vadd.f32 %v967, 1.0
          %v1013 = vadd.f32 %v969, 1.0
          %v1014 = vadd.f32 %v971, 1.0
          %v1015 = vadd.f32 %v973, 1.0
          %v1016 = vadd.f32 %v975, 1.0
          %v1017 = vadd.f32 %v977, 1.0
          %v1018 = vadd.f32 %v979, 1.0
          %v1019 = vadd.f32 %v981, 1.0
          %v1020 = vadd.f32 %v983, 1.0
          %v1021 = vadd.f32 %v985, 1.0
          %v1022 = vadd.f32 %v987, 1.0
          %v1023 = vadd.f32 %v989, 1.0
          %v1024 = vadd.f32 %v991, 1.0
          %v1025 = vadd.f32 %v993, 1.0
          %v1026 = vrcp.pop %v994
          %v1027 = vrcp.pop %v995
          %v1028 = vrcp.pop %v996
          %v1029 = vrcp.pop %v997
          %v1030 = vrcp.pop %v998
          %v1031 = vrcp.pop %v999
          %v1032 = vrcp.pop %v1000
          %v1033 = vrcp.pop %v1001
          %v1034 = vrcp.pop %v1002
          %v1035 = vrcp.pop %v1003
          %v1036 = vrcp.pop %v1004
          %v1037 = vrcp.pop %v1005
          %v1038 = vrcp.pop %v1006
          %v1039 = vrcp.pop %v1007
          %v1040 = vrcp.pop %v1008
          %v1041 = vrcp.pop %v1009
          %v1042 = vrcp.pop %v1010
          %v1043 = vrcp.pop %v1011
          %v1044 = vrcp.pop %v1012
          %v1045 = vrcp.pop %v1013
          %v1046 = vrcp.pop %v1014
          %v1047 = vrcp.pop %v1015
          %v1048 = vrcp.pop %v1016
          %v1049 = vrcp.pop %v1017
          %v1050 = vrcp.pop %v1018
          %v1051 = vrcp.pop %v1019
          %v1052 = vrcp.pop %v1020
          %v1053 = vrcp.pop %v1021
          %v1054 = vrcp.pop %v1022
          %v1055 = vrcp.pop %v1023
          %v1056 = vrcp.pop %v1024
          %v1057 = vrcp.pop %v1025
          %v1058 = vmul.f32 %v802, %v1026
          %v1059 = vmul.f32 %v803, %v1027
          %v1060 = vmul.f32 %v804, %v1028
          %v1061 = vmul.f32 %v805, %v1029
          %v1062 = vmul.f32 %v806, %v1030
          %v1063 = vmul.f32 %v807, %v1031
          %v1064 = vmul.f32 %v808, %v1032
          %v1065 = vmul.f32 %v809, %v1033
          %v1066 = vmul.f32 %v810, %v1034
          %v1067 = vmul.f32 %v811, %v1035
          %v1068 = vmul.f32 %v812, %v1036
          %v1069 = vmul.f32 %v813, %v1037
          %v1070 = vmul.f32 %v814, %v1038
          %v1071 = vmul.f32 %v815, %v1039
          %v1072 = vmul.f32 %v816, %v1040
          %v1073 = vmul.f32 %v817, %v1041
          %v1074 = vmul.f32 %v818, %v1042
          %v1075 = vmul.f32 %v819, %v1043
          %v1076 = vmul.f32 %v820, %v1044
          %v1077 = vmul.f32 %v821, %v1045
          %v1078 = vmul.f32 %v822, %v1046
          %v1079 = vmul.f32 %v823, %v1047
          %v1080 = vmul.f32 %v824, %v1048
          %v1081 = vmul.f32 %v825, %v1049
          %v1082 = vmul.f32 %v826, %v1050
          %v1083 = vmul.f32 %v827, %v1051
          %v1084 = vmul.f32 %v828, %v1052
          %v1085 = vmul.f32 %v829, %v1053
          %v1086 = vmul.f32 %v830, %v1054
          %v1087 = vmul.f32 %v831, %v1055
          %v1088 = vmul.f32 %v832, %v1056
          %v1089 = vmul.f32 %v833, %v1057
          %v1090 = vpack.c.bf16 %v1059, %v1058
          %v1091 = vpack.c.bf16 %v1061, %v1060
          %v1092 = vpack.c.bf16 %v1063, %v1062
          %v1093 = vpack.c.bf16 %v1065, %v1064
          %v1094 = vpack.c.bf16 %v1067, %v1066
          %v1095 = vpack.c.bf16 %v1069, %v1068
          %v1096 = vpack.c.bf16 %v1071, %v1070
          %v1097 = vpack.c.bf16 %v1073, %v1072
          %v1098 = vpack.c.bf16 %v1075, %v1074
          %v1099 = vpack.c.bf16 %v1077, %v1076
          %v1100 = vpack.c.bf16 %v1079, %v1078
          %v1101 = vpack.c.bf16 %v1081, %v1080
          %v1102 = vpack.c.bf16 %v1083, %v1082
          %v1103 = vpack.c.bf16 %v1085, %v1084
          %v1104 = vpack.c.bf16 %v1087, %v1086
          %v1105 = vpack.c.bf16 %v1089, %v1088
          %v1122 = vunpack.c.l.b16 %v1090
          %v1123 = vunpack.c.h.b16 %v1090
          %v1124 = vunpack.c.l.b16 %v1091
          %v1125 = vunpack.c.h.b16 %v1091
          %v1126 = vunpack.c.l.b16 %v1092
          %v1127 = vunpack.c.h.b16 %v1092
          %v1128 = vunpack.c.l.b16 %v1093
          %v1129 = vunpack.c.h.b16 %v1093
          %v1130 = vunpack.c.l.b16 %v1094
          %v1131 = vunpack.c.h.b16 %v1094
          %v1132 = vunpack.c.l.b16 %v1095
          %v1133 = vunpack.c.h.b16 %v1095
          %v1134 = vunpack.c.l.b16 %v1096
          %v1135 = vunpack.c.h.b16 %v1096
          %v1136 = vunpack.c.l.b16 %v1097
          %v1137 = vunpack.c.h.b16 %v1097
          %v1138 = vunpack.c.l.b16 %v1098
          %v1139 = vunpack.c.h.b16 %v1098
          %v1140 = vunpack.c.l.b16 %v1099
          %v1141 = vunpack.c.h.b16 %v1099
          %v1142 = vunpack.c.l.b16 %v1100
          %v1143 = vunpack.c.h.b16 %v1100
          %v1144 = vunpack.c.l.b16 %v1101
          %v1145 = vunpack.c.h.b16 %v1101
          %v1146 = vunpack.c.l.b16 %v1102
          %v1147 = vunpack.c.h.b16 %v1102
          %v1148 = vunpack.c.l.b16 %v1103
          %v1149 = vunpack.c.h.b16 %v1103
          %v1150 = vunpack.c.l.b16 %v1104
          %v1151 = vunpack.c.h.b16 %v1104
          %v1152 = vunpack.c.l.b16 %v1105
          %v1153 = vunpack.c.h.b16 %v1105
          %v1154 = vpack.c.b16 %v1122, %v1122
          %v1155 = vpack.c.b16 %v1123, %v1123
          %v1156 = vpack.c.b16 %v1124, %v1124
          %v1157 = vpack.c.b16 %v1125, %v1125
          %v1158 = vpack.c.b16 %v1126, %v1126
          %v1159 = vpack.c.b16 %v1127, %v1127
          %v1160 = vpack.c.b16 %v1128, %v1128
          %v1161 = vpack.c.b16 %v1129, %v1129
          %v1162 = vpack.c.b16 %v1130, %v1130
          %v1163 = vpack.c.b16 %v1131, %v1131
          %v1164 = vpack.c.b16 %v1132, %v1132
          %v1165 = vpack.c.b16 %v1133, %v1133
          %v1166 = vpack.c.b16 %v1134, %v1134
          %v1167 = vpack.c.b16 %v1135, %v1135
          %v1168 = vpack.c.b16 %v1136, %v1136
          %v1169 = vpack.c.b16 %v1137, %v1137
          %v1170 = vpack.c.b16 %v1138, %v1138
          %v1171 = vpack.c.b16 %v1139, %v1139
          %v1172 = vpack.c.b16 %v1140, %v1140
          %v1173 = vpack.c.b16 %v1141, %v1141
          %v1174 = vpack.c.b16 %v1142, %v1142
          %v1175 = vpack.c.b16 %v1143, %v1143
          %v1176 = vpack.c.b16 %v1144, %v1144
          %v1177 = vpack.c.b16 %v1145, %v1145
          %v1178 = vpack.c.b16 %v1146, %v1146
          %v1179 = vpack.c.b16 %v1147, %v1147
          %v1180 = vpack.c.b16 %v1148, %v1148
          %v1181 = vpack.c.b16 %v1149, %v1149
          %v1182 = vpack.c.b16 %v1150, %v1150
          %v1183 = vpack.c.b16 %v1151, %v1151
          %v1184 = vpack.c.b16 %v1152, %v1152
          %v1185 = vpack.c.b16 %v1153, %v1153
          %1218 = vst [vmem:[%s247] sm:$0xf] %v1154
          %1219 = vst [vmem:[%s247 + $0x4] sm:$0xf] %v1155
          %1220 = vst [vmem:[%s247 + $0x8] sm:$0xf] %v1156
          %1221 = vst [vmem:[%s247 + $0xc] sm:$0xf] %v1157
          %1222 = vst [vmem:[%s247 + $0x10] sm:$0xf] %v1158
          %1223 = vst [vmem:[%s247 + $0x14] sm:$0xf] %v1159
          %1224 = vst [vmem:[%s247 + $0x18] sm:$0xf] %v1160
          %1225 = vst [vmem:[%s247 + $0x1c] sm:$0xf] %v1161
          %1226 = vst [vmem:[%s247 + $0x20] sm:$0xf] %v1162
          %1227 = vst [vmem:[%s247 + $0x24] sm:$0xf] %v1163
          %1228 = vst [vmem:[%s247 + $0x28] sm:$0xf] %v1164
          %1229 = vst [vmem:[%s247 + $0x2c] sm:$0xf] %v1165
          %1230 = vst [vmem:[%s247 + $0x30] sm:$0xf] %v1166
          %1231 = vst [vmem:[%s247 + $0x34] sm:$0xf] %v1167
          %1232 = vst [vmem:[%s247 + $0x38] sm:$0xf] %v1168
          %1233 = vst [vmem:[%s247 + $0x3c] sm:$0xf] %v1169
          %1234 = vst [vmem:[%s247 + $0x40] sm:$0xf] %v1170
          %1235 = vst [vmem:[%s247 + $0x44] sm:$0xf] %v1171
          %1236 = vst [vmem:[%s247 + $0x48] sm:$0xf] %v1172
          %1237 = vst [vmem:[%s247 + $0x4c] sm:$0xf] %v1173
          %1238 = vst [vmem:[%s247 + $0x50] sm:$0xf] %v1174
          %1239 = vst [vmem:[%s247 + $0x54] sm:$0xf] %v1175
          %1240 = vst [vmem:[%s247 + $0x58] sm:$0xf] %v1176
          %1241 = vst [vmem:[%s247 + $0x5c] sm:$0xf] %v1177
          %1242 = vst [vmem:[%s247 + $0x60] sm:$0xf] %v1178
          %1243 = vst [vmem:[%s247 + $0x64] sm:$0xf] %v1179
          %1244 = vst [vmem:[%s247 + $0x68] sm:$0xf] %v1180
          %1245 = vst [vmem:[%s247 + $0x6c] sm:$0xf] %v1181
          %1246 = vst [vmem:[%s247 + $0x70] sm:$0xf] %v1182
          %1247 = vst [vmem:[%s247 + $0x74] sm:$0xf] %v1183
          %1248 = vst [vmem:[%s247 + $0x78] sm:$0xf] %v1184
          %1249 = vst [vmem:[%s247 + $0x7c] sm:$0xf] %v1185
        $region40: #{stem_fn.1} parent=31 // pred_fallthru
          _
        %s1250 = sand.u32 %s139, 1
        %s1251 = scalar_lea.sflag [#allocation4], %s1250
        %s1252 = sand.u32 %s139, 1
        %s1253 = smul.addr %s1252, 128
        %s1254 = scalar_lea.vmem [#allocation3], %s1253
        // Predicated region
        $region41: #{stem_fn.1} parent=31 // pred_check
          %p1255 = pneg %p149
        $region42: #{stem_fn.1} parent=31 // pred_check_branch
          %1257 = sbr.rel (%p1255) target = $region44
        $region43: #{stem_fn.1} parent=31 // pred_region
          %s1258 = smul.u32 32, %s24
          %s1260 = ssub.s32 2048, 2048
          %1261 = vsyncadd %s1251, %s1260
          %s1262 = sadd.s32 %s25, %s1258
          %s1263 = smul.addr %s23, 32
          %s1264 = sadd.s32 %s1262, %s1263
          %s1265 = smul.addr %s1264, 64
          %s1266 = scalar_lea.hbm %s3, %s1265
          %s1267 = sshll.u32 %s1254, 4
          %s1268 = int_to_ptr.vmem [resolvable:$true] %s1267
          %1273 = dma.vmem_to_hbm [thread:$0]  %s1268, 2048, %s1266, %s1251, 64, 64, 4
        $region44: #{stem_fn.1} parent=31 // pred_fallthru
          _
      $region32: #{stem_fn.1} parent=5 // pred_fallthru
        _
      %p1274 = scmp.le.s32.totalorder 2, %s12
      // Predicated region
      $region45: #{stem_fn.1} parent=5 // pred_check
        %p1275 = pneg %p1274
      $region46: #{stem_fn.1} parent=5 // pred_check_branch
        %1277 = sbr.rel (%p1275) target = $region48
      $region47: #{stem_fn.1} parent=5 // pred_region
        %s1278 = ssub.s32 %s12, 2
        // Predicated region
        $region49: #{stem_fn.1} parent=47 // pred_check
          %p1279 = pneg %p155
        $region50: #{stem_fn.1} parent=47 // pred_check_branch
          %1281 = sbr.rel (%p1279) target = $region52
        $region51: #{stem_fn.1} parent=47 // pred_region
          %s1282 = sand.u32 %s140, 1
          %s1283 = scalar_lea.sflag [#allocation4], %s1282
          %s1284 = sand.u32 %s140, 1
          %s1285 = smul.addr %s1284, 128
          %s1286 = scalar_lea.vmem [#allocation3], %s1285
          %1287 = dma.done %s1283, 2048
        $region52: #{stem_fn.1} parent=47 // pred_fallthru
          _
      $region48: #{stem_fn.1} parent=5 // pred_fallthru
        _
    $region6: #{stem_fn.1} parent=1 // loop_footer
      %s16 = sadd.s32 1, %s12
    $region7: #{stem_fn.1} parent=1 // loop_footer_branch
      %11 = sbr.rel target = $region3
    $region8: #{stem_fn.1} parent=1 // loop_exit
      _
    %1288 = vsyncpa [#allocation4], 1
    %s1289 = scalar_lea.sflag [#allocation4], 1
    %1290 = vsyncpa %s1289, 1

</llo_original>
